<compile_context>
chip_gen: v6e
topology: v6e:2x2x1
jax: 0.10.0
libtpu: 0.0.40
codegen_flags: <defaults>
</compile_context>

<pallas_src>
import jax
import jax.numpy as jnp
import numpy as np
from jax.experimental import pallas as pl
from jax.experimental.pallas import tpu as pltpu

_HIGHEST = jax.lax.Precision.HIGHEST  # faithful to PyTorch f32 matmuls


def _value_mlp_kernel(x_ref, w1_ref, b1_ref, w2_ref, b2_ref, w3_ref, b3_ref,
                      o_ref):
    """One batch tile of the fused ValueFunction MLP.

    x_ref  : (tb, D)  state tile
    w1_ref : (D, H)   layer-1 weights, (in, out) layout
    b1_ref : (1, H)
    w2_ref : (H, H)   layer-2 weights, (in, out) layout
    b2_ref : (1, H)
    w3_ref : (1, H)   final-layer weights kept as a row
    b3_ref : (1, 1)
    o_ref  : (1, tb)  lane-dense value row (squeeze handled by wrapper reshape)
    """
    x = x_ref[...]
    h = jnp.dot(x, w1_ref[...], precision=_HIGHEST,
                preferred_element_type=jnp.float32) + b1_ref[...]
    h = jnp.maximum(h, 0.0)
    h = jnp.dot(h, w2_ref[...], precision=_HIGHEST,
                preferred_element_type=jnp.float32) + b2_ref[...]
    h = jnp.maximum(h, 0.0)                                  # (tb, H)
    # Final (H -> 1) layer with the squeeze absorbed into the layout:
    # contract H of w3 (1, H) with H of h (tb, H) -> (1, tb).  Batch stays on
    # the lane axis, so the store is an unmasked lane-dense vst and no
    # (tb, 1) intermediate exists in VMEM.
    v = jax.lax.dot_general(
        w3_ref[...], h,
        dimension_numbers=(((1,), (1,)), ((), ())),
        precision=_HIGHEST,
        preferred_element_type=jnp.float32)                  # (1, tb)
    o_ref[...] = (v + b3_ref[...]).astype(o_ref.dtype)


def value_function_forward(params, state, *, block_batch=256):
    """Pallas-fused equivalent of ValueFunction.forward(state) -> (B,)."""
    if state.ndim == 1:
        return value_function_forward(params, state[None, :],
                                      block_batch=block_batch)[0]

    B, D = state.shape
    H = params["w1"].shape[0]
    dtype = state.dtype

    # PyTorch stores Linear weights as (out_features, in_features); present the
    # kernel with (in, out) so every layer is a plain `x @ w`.  For repeated
    # calls these one-time transposes/reshapes should be hoisted out.
    w1 = params["w1"].T.astype(dtype)              # (D, H)
    b1 = params["b1"].reshape(1, H).astype(dtype)
    w2 = params["w2"].T.astype(dtype)              # (H, H)
    b2 = params["b2"].reshape(1, H).astype(dtype)
    w3 = params["w3"].reshape(1, H).astype(dtype)  # (1, H)
    b3 = params["b3"].reshape(1, 1).astype(dtype)

    # Tile the batch: each block (plus resident weights) is small relative to
    # VMEM on all of v5e/v6e/v7x, and the grid pipelines / megacore-shards.
    tb = B if B <= block_batch else block_batch
    Bp = ((B + tb - 1) // tb) * tb
    x = state if Bp == B else jnp.pad(state, ((0, Bp - B), (0, 0)))

    out2d = pl.pallas_call(
        _value_mlp_kernel,
        out_shape=jax.ShapeDtypeStruct((1, Bp), dtype),
        grid=(Bp // tb,),
        in_specs=[
            pl.BlockSpec((tb, D), lambda i: (i, 0)),   # state tile (pipelined)
            pl.BlockSpec((D, H), lambda i: (0, 0)),    # weights: VMEM-resident
            pl.BlockSpec((1, H), lambda i: (0, 0)),
            pl.BlockSpec((H, H), lambda i: (0, 0)),
            pl.BlockSpec((1, H), lambda i: (0, 0)),
            pl.BlockSpec((1, H), lambda i: (0, 0)),
            pl.BlockSpec((1, 1), lambda i: (0, 0)),
        ],
        out_specs=pl.BlockSpec((1, tb), lambda i: (0, i)),   # lane-dense values
        compiler_params=pltpu.CompilerParams(
            dimension_semantics=("parallel",),
        ),
    )(x, w1, b1, w2, b2, w3, b3)

    # torch's .squeeze(-1): metadata-only — slice off padding and drop the
    # leading unit dim (no extra kernel, no extra HBM round trip).
    return out2d[0, :B]


def init_value_function_params(key, state_dim, hidden_dim=256, n_hidden=2,
                               dtype=jnp.float32):
    if n_hidden != 2:
        # TODO(synk): generalize the fused kernel to arbitrary n_hidden.
        raise NotImplementedError("fused kernel implements the default n_hidden=2")
    k1, k2, k3, k4, k5, k6 = jax.random.split(key, 6)

    def linear(kw, kb, fan_in, fan_out):
        bound = 1.0 / float(np.sqrt(fan_in))
        w = jax.random.uniform(kw, (fan_out, fan_in), dtype, -bound, bound)
        b = jax.random.uniform(kb, (fan_out,), dtype, -bound, bound)
        return w, b

    w1, b1 = linear(k1, k2, state_dim, hidden_dim)
    w2, b2 = linear(k3, k4, hidden_dim, hidden_dim)
    w3, b3 = linear(k5, k6, hidden_dim, 1)
    return {"w1": w1, "b1": b1, "w2": w2, "b2": b2, "w3": w3, "b3": b3}


def value_function_ref(params, state):
    """Pure-JAX reference (mirrors the PyTorch forward)."""
    h = jnp.maximum(
        jnp.dot(state, params["w1"].T, precision=_HIGHEST) + params["b1"], 0.0)
    h = jnp.maximum(
        jnp.dot(h, params["w2"].T, precision=_HIGHEST) + params["b2"], 0.0)
    v = jnp.dot(h, params["w3"].T, precision=_HIGHEST) + params["b3"]  # (B, 1)
    return jnp.squeeze(v, axis=-1)


if __name__ == "__main__":
    key = jax.random.PRNGKey(0)
    kp, kx1, kx2 = jax.random.split(key, 3)

    state_dim, hidden_dim, batch = 17, 32, 2
    params = init_value_function_params(kp, state_dim, hidden_dim)

    # Case 1: small batch (single full-extent block).
    x_small = jax.random.normal(kx1, (batch, state_dim), dtype=jnp.float32)
    y1 = jax.block_until_ready(value_function_forward(params, x_small))
    r1 = value_function_ref(params, x_small)
    assert y1.shape == (batch,), (y1.shape, (batch,))
    np.testing.assert_allclose(np.asarray(y1), np.asarray(r1),
                               rtol=5e-3, atol=5e-3)

    # Case 2: batch that does not divide the 256-row tile (tiled + padded path).
    x_big = jax.random.normal(kx2, (260, state_dim), dtype=jnp.float32)
    y2 = jax.block_until_ready(value_function_forward(params, x_big))
    r2 = value_function_ref(params, x_big)
    assert y2.shape == (260,), y2.shape
    np.testing.assert_allclose(np.asarray(y2), np.asarray(r2),
                               rtol=5e-3, atol=5e-3)

    print("KERNEL_OK")
</pallas_src>

<mosaic_0001>
module attributes {stable_mosaic.version = 11 : i64} {
  func.func @_value_mlp_kernel(%arg0: i32, %arg1: memref<2x17xf32, #tpu.memory_space<vmem>>, %arg2: memref<17x32xf32, #tpu.memory_space<vmem>>, %arg3: memref<1x32xf32, #tpu.memory_space<vmem>>, %arg4: memref<32x32xf32, #tpu.memory_space<vmem>>, %arg5: memref<1x32xf32, #tpu.memory_space<vmem>>, %arg6: memref<1x32xf32, #tpu.memory_space<vmem>>, %arg7: memref<1x1xf32, #tpu.memory_space<vmem>>, %arg8: memref<1x2xf32, #tpu.memory_space<vmem>>) attributes {dimension_semantics = [#tpu.dimension_semantics<parallel>], iteration_bounds = array<i64: 1>, scalar_prefetch = 0 : i64, scratch_operands = 0 : i64, tpu.core_type = #tpu.core_type<tc>, window_params = [{transform_indices = @transform_0, window_bounds = array<i64: 2, 17>}, {pipeline_mode = #tpu.pipeline_mode<synchronous>, transform_indices = @transform_1, window_bounds = array<i64: 17, 32>}, {pipeline_mode = #tpu.pipeline_mode<synchronous>, transform_indices = @transform_2, window_bounds = array<i64: 1, 32>}, {pipeline_mode = #tpu.pipeline_mode<synchronous>, transform_indices = @transform_3, window_bounds = array<i64: 32, 32>}, {pipeline_mode = #tpu.pipeline_mode<synchronous>, transform_indices = @transform_4, window_bounds = array<i64: 1, 32>}, {pipeline_mode = #tpu.pipeline_mode<synchronous>, transform_indices = @transform_5, window_bounds = array<i64: 1, 32>}, {pipeline_mode = #tpu.pipeline_mode<synchronous>, transform_indices = @transform_6, window_bounds = array<i64: 1, 1>}, {transform_indices = @transform_7, window_bounds = array<i64: 1, 2>}]} {
    %c0 = arith.constant 0 : index
    %c0_0 = arith.constant 0 : index
    %0 = vector.load %arg1[%c0, %c0_0] : memref<2x17xf32, #tpu.memory_space<vmem>>, vector<2x17xf32>
    %c0_1 = arith.constant 0 : index
    %c0_2 = arith.constant 0 : index
    %1 = vector.load %arg2[%c0_1, %c0_2] : memref<17x32xf32, #tpu.memory_space<vmem>>, vector<17x32xf32>
    %cst = arith.constant dense<0.000000e+00> : vector<2x32xf32>
    %2 = tpu.matmul %0, %1, %cst {dimension_numbers = #tpu.dot_dimension_numbers<[1], [0], [0], [1], [0, 0, 1, 1], [], []>, precision = #tpu.contract_precision<fp32>} : vector<2x17xf32>, vector<17x32xf32>, vector<2x32xf32> -> vector<2x32xf32>
    %c0_3 = arith.constant 0 : index
    %c0_4 = arith.constant 0 : index
    %3 = vector.load %arg3[%c0_3, %c0_4] : memref<1x32xf32, #tpu.memory_space<vmem>>, vector<1x32xf32>
    %4 = vector.broadcast %3 : vector<1x32xf32> to vector<2x32xf32>
    %5 = arith.addf %2, %4 : vector<2x32xf32>
    %cst_5 = arith.constant 0.000000e+00 : f32
    %6 = vector.broadcast %cst_5 : f32 to vector<2x32xf32>
    %7 = arith.maximumf %5, %6 : vector<2x32xf32>
    %c0_6 = arith.constant 0 : index
    %c0_7 = arith.constant 0 : index
    %8 = vector.load %arg4[%c0_6, %c0_7] : memref<32x32xf32, #tpu.memory_space<vmem>>, vector<32x32xf32>
    %cst_8 = arith.constant dense<0.000000e+00> : vector<2x32xf32>
    %9 = tpu.matmul %7, %8, %cst_8 {dimension_numbers = #tpu.dot_dimension_numbers<[1], [0], [0], [1], [0, 0, 1, 1], [], []>, precision = #tpu.contract_precision<fp32>} : vector<2x32xf32>, vector<32x32xf32>, vector<2x32xf32> -> vector<2x32xf32>
    %c0_9 = arith.constant 0 : index
    %c0_10 = arith.constant 0 : index
    %10 = vector.load %arg5[%c0_9, %c0_10] : memref<1x32xf32, #tpu.memory_space<vmem>>, vector<1x32xf32>
    %11 = vector.broadcast %10 : vector<1x32xf32> to vector<2x32xf32>
    %12 = arith.addf %9, %11 : vector<2x32xf32>
    %cst_11 = arith.constant 0.000000e+00 : f32
    %13 = vector.broadcast %cst_11 : f32 to vector<2x32xf32>
    %14 = arith.maximumf %12, %13 : vector<2x32xf32>
    %c0_12 = arith.constant 0 : index
    %c0_13 = arith.constant 0 : index
    %15 = vector.load %arg6[%c0_12, %c0_13] : memref<1x32xf32, #tpu.memory_space<vmem>>, vector<1x32xf32>
    %cst_14 = arith.constant dense<0.000000e+00> : vector<1x2xf32>
    %16 = tpu.matmul %15, %14, %cst_14 {dimension_numbers = #tpu.dot_dimension_numbers<[1], [1], [0], [0], [0, 0, 1, 0], [], []>, precision = #tpu.contract_precision<fp32>} : vector<1x32xf32>, vector<2x32xf32>, vector<1x2xf32> -> vector<1x2xf32>
    %c0_15 = arith.constant 0 : index
    %c0_16 = arith.constant 0 : index
    %17 = vector.load %arg7[%c0_15, %c0_16] : memref<1x1xf32, #tpu.memory_space<vmem>>, vector<1x1xf32>
    %18 = vector.broadcast %17 : vector<1x1xf32> to vector<1x2xf32>
    %19 = arith.addf %16, %18 : vector<1x2xf32>
    %c0_17 = arith.constant 0 : index
    %c0_18 = arith.constant 0 : index
    %20 = vector.load %arg8[%c0_17, %c0_18] : memref<1x2xf32, #tpu.memory_space<vmem>>, vector<1x2xf32>
    tpu.vector_store %arg8[%c0_17, %c0_18], %19 {strides = array<i32>} : memref<1x2xf32, #tpu.memory_space<vmem>>, vector<1x2xf32>,
    return
  }
  func.func @transform_0(%arg0: i32) -> (i32, i32) {
    %c0_i32 = arith.constant 0 : i32
    %c0_i32_0 = arith.constant 0 : i32
    return %arg0, %c0_i32 : i32, i32
  }
  func.func @transform_1(%arg0: i32) -> (i32, i32) {
    %c0_i32 = arith.constant 0 : i32
    %c0_i32_0 = arith.constant 0 : i32
    %c0_i32_1 = arith.constant 0 : i32
    return %c0_i32, %c0_i32_0 : i32, i32
  }
  func.func @transform_2(%arg0: i32) -> (i32, i32) {
    %c0_i32 = arith.constant 0 : i32
    %c0_i32_0 = arith.constant 0 : i32
    %c0_i32_1 = arith.constant 0 : i32
    return %c0_i32, %c0_i32_0 : i32, i32
  }
  func.func @transform_3(%arg0: i32) -> (i32, i32) {
    %c0_i32 = arith.constant 0 : i32
    %c0_i32_0 = arith.constant 0 : i32
    %c0_i32_1 = arith.constant 0 : i32
    return %c0_i32, %c0_i32_0 : i32, i32
  }
  func.func @transform_4(%arg0: i32) -> (i32, i32) {
    %c0_i32 = arith.constant 0 : i32
    %c0_i32_0 = arith.constant 0 : i32
    %c0_i32_1 = arith.constant 0 : i32
    return %c0_i32, %c0_i32_0 : i32, i32
  }
  func.func @transform_5(%arg0: i32) -> (i32, i32) {
    %c0_i32 = arith.constant 0 : i32
    %c0_i32_0 = arith.constant 0 : i32
    %c0_i32_1 = arith.constant 0 : i32
    return %c0_i32, %c0_i32_0 : i32, i32
  }
  func.func @transform_6(%arg0: i32) -> (i32, i32) {
    %c0_i32 = arith.constant 0 : i32
    %c0_i32_0 = arith.constant 0 : i32
    %c0_i32_1 = arith.constant 0 : i32
    return %c0_i32, %c0_i32_0 : i32, i32
  }
  func.func @transform_7(%arg0: i32) -> (i32, i32) {
    %c0_i32 = arith.constant 0 : i32
    %c0_i32_0 = arith.constant 0 : i32
    return %c0_i32, %arg0 : i32, i32
  }
}

</mosaic_0001>

<llo_original>
// kernel: tpu_custom_call.1
$region0: #{tpu_custom_call.1}
  #allocation0 [shape = 'u32[]', space=smem, size = 0x4, offset = 0x4, fixed_abs, tag = 'smem constant byte address 0x4 - core index']
  #allocation1 [shape = 'u32[144,128]{1,0:T(1,128)}', space=vmem, size = 0x12000, scoped, tag = 'internal scratch']
  #allocation2 [shape = 'f32[1,1]{1,0:T(1,128)S(1)}', space=vmem, size = 0x200, scoped, tag = 'scoped memory for tpu_custom_call.1']
  %s0 = inlined_call_operand.vmem [shape: f32[2,17], index: 0, kind: input, shape index: {}]
  %s1 = inlined_call_operand.hbm [shape: f32[17,32], index: 1, kind: input, shape index: {}]
  %s2 = inlined_call_operand.vmem [shape: f32[1,32], index: 2, kind: input, shape index: {}]
  %s3 = inlined_call_operand.hbm [shape: f32[32,32], index: 3, kind: input, shape index: {}]
  %s4 = inlined_call_operand.vmem [shape: f32[1,32], index: 4, kind: input, shape index: {}]
  %s5 = inlined_call_operand.vmem [shape: f32[1,32], index: 5, kind: input, shape index: {}]
  %s6 = inlined_call_operand.<no memory space> [shape: f32[1,1], index: 6, kind: input, shape index: {}]
  %s7 = inlined_call_operand.hbm [shape: f32[1,2], index: 7, kind: output, shape index: {}]
  %s8 = sld [smem:[#allocation0]]
  $region46: #{tpu_custom_call.1} parent=0
    _
  %s10 = ssub.s32 1, %s8
  %s11 = scalar_select 0, %s10, %s8
  %v12 = vstv %s6
  %13 = vst [vmem:[#allocation2] sm:$0x1] %v12
  $region1: #{tpu_custom_call.1} parent=0
    #allocation3 [shape = 'u8[12288]{0}', space=vmem, size = 0x3000, scoped, tag = 'input window, operand 1, single buffered']
    #allocation4 [shape = 's32[1]{0}', space=sflag, size = 0x4, scoped, tag = 'scoped memory for tpu_custom_call.1']
    #allocation5 [shape = 's32[1]{0}', space=sflag, size = 0x4, scoped, tag = 'scoped memory for tpu_custom_call.1']
    #allocation6 [shape = 'u8[16384]{0}', space=vmem, size = 0x4000, scoped, tag = 'input window, operand 3, single buffered']
    #allocation7 [shape = 's32[1]{0}', space=sflag, size = 0x4, scoped, tag = 'scoped memory for tpu_custom_call.1']
    #allocation8 [shape = 'u8[512]{0}', space=vmem, size = 0x400, scoped, tag = 'output window, operand 0, single buffered']
    %14 = vsyncpa [#allocation4], 0
    %15 = vsyncpa [#allocation7], 0
    %16 = vsyncpa [#allocation5], 0
    // Predicated region
    $region2: #{tpu_custom_call.1} parent=1 // pred_check
      _
    $region3: #{tpu_custom_call.1} parent=1 // pred_check_branch
      %18 = sbr.rel (0) target = $region5
    $region4: #{tpu_custom_call.1} parent=1 // pred_region
      _
    $region5: #{tpu_custom_call.1} parent=1 // pred_fallthru
      _
    // Predicated region
    $region6: #{tpu_custom_call.1} parent=1 // pred_check
      _
    $region7: #{tpu_custom_call.1} parent=1 // pred_check_branch
      %20 = sbr.rel (0) target = $region9
    $region8: #{tpu_custom_call.1} parent=1 // pred_region
      %s22 = ssub.s32 384, 384
      %23 = vsyncadd [#allocation4], %s22
      %s24 = sshll.u32 [#allocation3], 4
      %s25 = int_to_ptr.vmem [resolvable:$true] %s24
      %30 = dma.hbm_to_vmem [thread:$0]  %s1, 384, %s25, [#allocation4], 128, 128, 8
    $region9: #{tpu_custom_call.1} parent=1 // pred_fallthru
      _
    // Predicated region
    $region10: #{tpu_custom_call.1} parent=1 // pred_check
      _
    $region11: #{tpu_custom_call.1} parent=1 // pred_check_branch
      %32 = sbr.rel (0) target = $region13
    $region12: #{tpu_custom_call.1} parent=1 // pred_region
      _
    $region13: #{tpu_custom_call.1} parent=1 // pred_fallthru
      _
    // Predicated region
    $region14: #{tpu_custom_call.1} parent=1 // pred_check
      _
    $region15: #{tpu_custom_call.1} parent=1 // pred_check_branch
      %34 = sbr.rel (0) target = $region17
    $region16: #{tpu_custom_call.1} parent=1 // pred_region
      %s36 = ssub.s32 512, 512
      %37 = vsyncadd [#allocation7], %s36
      %s38 = sshll.u32 [#allocation6], 4
      %s39 = int_to_ptr.vmem [resolvable:$true] %s38
      %44 = dma.hbm_to_vmem [thread:$0]  %s3, 512, %s39, [#allocation7], 128, 128, 8
    $region17: #{tpu_custom_call.1} parent=1 // pred_fallthru
      _
    // Predicated region
    $region18: #{tpu_custom_call.1} parent=1 // pred_check
      _
    $region19: #{tpu_custom_call.1} parent=1 // pred_check_branch
      %46 = sbr.rel (0) target = $region21
    $region20: #{tpu_custom_call.1} parent=1 // pred_region
      _
    $region21: #{tpu_custom_call.1} parent=1 // pred_fallthru
      _
    // Predicated region
    $region22: #{tpu_custom_call.1} parent=1 // pred_check
      _
    $region23: #{tpu_custom_call.1} parent=1 // pred_check_branch
      %48 = sbr.rel (0) target = $region25
    $region24: #{tpu_custom_call.1} parent=1 // pred_region
      _
    $region25: #{tpu_custom_call.1} parent=1 // pred_fallthru
      _
    // Predicated region
    $region26: #{tpu_custom_call.1} parent=1 // pred_check
      _
    $region27: #{tpu_custom_call.1} parent=1 // pred_check_branch
      %50 = sbr.rel (0) target = $region29
    $region28: #{tpu_custom_call.1} parent=1 // pred_region
      _
    $region29: #{tpu_custom_call.1} parent=1 // pred_fallthru
      _
    // Predicated region
    $region30: #{tpu_custom_call.1} parent=1 // pred_check
      _
    $region31: #{tpu_custom_call.1} parent=1 // pred_check_branch
      %52 = sbr.rel (0) target = $region33
    $region32: #{tpu_custom_call.1} parent=1 // pred_region
      %53 = dma.done [#allocation4], 384
    $region33: #{tpu_custom_call.1} parent=1 // pred_fallthru
      _
    // Predicated region
    $region34: #{tpu_custom_call.1} parent=1 // pred_check
      _
    $region35: #{tpu_custom_call.1} parent=1 // pred_check_branch
      %55 = sbr.rel (0) target = $region37
    $region36: #{tpu_custom_call.1} parent=1 // pred_region
      %56 = dma.done [#allocation7], 512
    $region37: #{tpu_custom_call.1} parent=1 // pred_fallthru
      _
    %v57 = vld [vmem:[%s0] sm:$0x3]
    %v58 = vld [vmem:[#allocation3] sm:$0xff]
    %v59 = vld [vmem:[#allocation3 + $0x8] sm:$0xff]
    %v60 = vld [vmem:[#allocation3 + $0x10] sm:$0x1]
    %v61 = vld [vmem:[%s2] sm:$0x1]
    %v63 = vlaneseq
    %v64 = vshrl.u32 %v63, 7
    %v65 = vsub.s32 0, %v64
    %v66 = vrot.slane %v61, %v65
    %vm68 = vcmask 138240
    %v70 = vsel %vm68, %v57, 0
    %vm72 = vcmask 1040384
    %v74 = vsel %vm72, %v60, 0
    %76 = vmatprep.subr.mxu0 0.0
    %77 = vmatpush1.msra.mxu0 0.0
    %78 = vmatprep.subr.mxu0 0.0
    %79 = vmatpush1.msra.mxu0 0.0
    %80 = vmatprep.subr.mxu0 0.0
    %81 = vmatpush1.msra.mxu0 0.0
    %82 = vmatprep.subr.mxu0 0.0
    %83 = vmatpush1.msra.mxu0 0.0
    %84 = vmatprep.subr.mxu0 0.0
    %85 = vmatpush1.msra.mxu0 0.0
    %86 = vmatprep.subr.mxu0 0.0
    %87 = vmatpush1.msra.mxu0 0.0
    %88 = vmatprep.subr.mxu0 0.0
    %89 = vmatpush1.msra.mxu0 0.0
    %90 = vmatprep.subr.mxu0 0.0
    %91 = vmatpush1.msra.mxu0 0.0
    %92 = vmatprep.subr.mxu0 0.0
    %93 = vmatpush1.msra.mxu0 0.0
    %94 = vmatprep.subr.mxu0 0.0
    %95 = vmatpush1.msra.mxu0 0.0
    %96 = vmatprep.subr.mxu0 0.0
    %97 = vmatpush1.msra.mxu0 0.0
    %98 = vmatprep.subr.mxu0 0.0
    %99 = vmatpush1.msra.mxu0 0.0
    %100 = vmatprep.subr.mxu0 0.0
    %101 = vmatpush1.msra.mxu0 0.0
    %102 = vmatprep.subr.mxu0 0.0
    %v103 = vand.u32 %v74, 4294901760
    %104 = vmatpush1.msra.mxu0 %v103
    %105 = vmatprep.subr.mxu0 0.0
    %v106 = vand.u32 %v59, 4294901760
    %107 = vmatpush1.msra.mxu0 %v106
    %108 = vmatprep.subr.mxu0 0.0
    %v109 = vand.u32 %v58, 4294901760
    %110 = vmatpush1.msra.mxu0 %v109
    %111 = vmatprep.subr.mxu0 0.0
    %112 = vmatpush2.msra.mxu0 0.0
    %113 = vmatprep.subr.mxu0 0.0
    %114 = vmatpush2.msra.mxu0 0.0
    %115 = vmatprep.subr.mxu0 0.0
    %116 = vmatpush2.msra.mxu0 0.0
    %117 = vmatprep.subr.mxu0 0.0
    %118 = vmatpush2.msra.mxu0 0.0
    %119 = vmatprep.subr.mxu0 0.0
    %120 = vmatpush2.msra.mxu0 0.0
    %121 = vmatprep.subr.mxu0 0.0
    %122 = vmatpush2.msra.mxu0 0.0
    %123 = vmatprep.subr.mxu0 0.0
    %124 = vmatpush2.msra.mxu0 0.0
    %125 = vmatprep.subr.mxu0 0.0
    %126 = vmatpush2.msra.mxu0 0.0
    %127 = vmatprep.subr.mxu0 0.0
    %128 = vmatpush2.msra.mxu0 0.0
    %129 = vmatprep.subr.mxu0 0.0
    %130 = vmatpush2.msra.mxu0 0.0
    %131 = vmatprep.subr.mxu0 0.0
    %132 = vmatpush2.msra.mxu0 0.0
    %133 = vmatprep.subr.mxu0 0.0
    %134 = vmatpush2.msra.mxu0 0.0
    %135 = vmatprep.subr.mxu0 0.0
    %136 = vmatpush2.msra.mxu0 0.0
    %137 = vmatprep.subr.mxu0 0.0
    %138 = vmatpush2.msra.mxu0 0.0
    %139 = vmatprep.subr.mxu0 0.0
    %140 = vmatpush2.msra.mxu0 0.0
    %141 = vmatprep.subr.mxu0 0.0
    %142 = vmatpush2.msra.mxu0 0.0
    %143 = vmatprep.mubr.f32.mxu0 0.0
    %v144 = vand.u32 %v70, 4294901760
    %v145 = vsub.f32 %v70, %v144
    %v146 = vand.u32 %v145, 4294901760
    %v147 = vsub.f32 %v145, %v146
    %v148 = vand.u32 %v147, 4294901760
    %149 = vmatmul.mubr.f32.gmra.mxu0 %v148
    %v150 = vpop.f32.mrf.mxu0
    %v151 = vadd.f32 %v66, %v150
    %v152 = vpop.f32.mrf.mxu0
    %153 = vdwg.mxu0
    %154 = vmatprep.subr.mxu0 0.0
    %155 = vmatpush1.msra.mxu0 0.0
    %156 = vmatprep.subr.mxu0 0.0
    %157 = vmatpush1.msra.mxu0 0.0
    %158 = vmatprep.subr.mxu0 0.0
    %159 = vmatpush1.msra.mxu0 0.0
    %160 = vmatprep.subr.mxu0 0.0
    %161 = vmatpush1.msra.mxu0 0.0
    %162 = vmatprep.subr.mxu0 0.0
    %163 = vmatpush1.msra.mxu0 0.0
    %164 = vmatprep.subr.mxu0 0.0
    %165 = vmatpush1.msra.mxu0 0.0
    %166 = vmatprep.subr.mxu0 0.0
    %167 = vmatpush1.msra.mxu0 0.0
    %168 = vmatprep.subr.mxu0 0.0
    %169 = vmatpush1.msra.mxu0 0.0
    %170 = vmatprep.subr.mxu0 0.0
    %171 = vmatpush1.msra.mxu0 0.0
    %172 = vmatprep.subr.mxu0 0.0
    %173 = vmatpush1.msra.mxu0 0.0
    %174 = vmatprep.subr.mxu0 0.0
    %175 = vmatpush1.msra.mxu0 0.0
    %176 = vmatprep.subr.mxu0 0.0
    %177 = vmatpush1.msra.mxu0 0.0
    %178 = vmatprep.subr.mxu0 0.0
    %179 = vmatpush1.msra.mxu0 0.0
    %180 = vmatprep.subr.mxu0 0.0
    %v181 = vand.u32 %v74, 4294901760
    %v182 = vsub.f32 %v74, %v181
    %v183 = vand.u32 %v182, 4294901760
    %v184 = vsub.f32 %v182, %v183
    %v185 = vand.u32 %v184, 4294901760
    %186 = vmatpush1.msra.mxu0 %v185
    %187 = vmatprep.subr.mxu0 0.0
    %v188 = vand.u32 %v59, 4294901760
    %v189 = vsub.f32 %v59, %v188
    %v190 = vand.u32 %v189, 4294901760
    %v191 = vsub.f32 %v189, %v190
    %v192 = vand.u32 %v191, 4294901760
    %193 = vmatpush1.msra.mxu0 %v192
    %194 = vmatprep.subr.mxu0 0.0
    %v195 = vand.u32 %v58, 4294901760
    %v196 = vsub.f32 %v58, %v195
    %v197 = vand.u32 %v196, 4294901760
    %v198 = vsub.f32 %v196, %v197
    %v199 = vand.u32 %v198, 4294901760
    %200 = vmatpush1.msra.mxu0 %v199
    %201 = vmatprep.subr.mxu0 0.0
    %202 = vmatpush2.msra.mxu0 0.0
    %203 = vmatprep.subr.mxu0 0.0
    %204 = vmatpush2.msra.mxu0 0.0
    %205 = vmatprep.subr.mxu0 0.0
    %206 = vmatpush2.msra.mxu0 0.0
    %207 = vmatprep.subr.mxu0 0.0
    %208 = vmatpush2.msra.mxu0 0.0
    %209 = vmatprep.subr.mxu0 0.0
    %210 = vmatpush2.msra.mxu0 0.0
    %211 = vmatprep.subr.mxu0 0.0
    %212 = vmatpush2.msra.mxu0 0.0
    %213 = vmatprep.subr.mxu0 0.0
    %214 = vmatpush2.msra.mxu0 0.0
    %215 = vmatprep.subr.mxu0 0.0
    %216 = vmatpush2.msra.mxu0 0.0
    %217 = vmatprep.subr.mxu0 0.0
    %218 = vmatpush2.msra.mxu0 0.0
    %219 = vmatprep.subr.mxu0 0.0
    %220 = vmatpush2.msra.mxu0 0.0
    %221 = vmatprep.subr.mxu0 0.0
    %222 = vmatpush2.msra.mxu0 0.0
    %223 = vmatprep.subr.mxu0 0.0
    %224 = vmatpush2.msra.mxu0 0.0
    %225 = vmatprep.subr.mxu0 0.0
    %226 = vmatpush2.msra.mxu0 0.0
    %227 = vmatprep.subr.mxu0 0.0
    %228 = vmatpush2.msra.mxu0 0.0
    %229 = vmatprep.subr.mxu0 0.0
    %230 = vmatpush2.msra.mxu0 0.0
    %231 = vmatprep.subr.mxu0 0.0
    %232 = vmatpush2.msra.mxu0 0.0
    %233 = vmatprep.mubr.f32.mxu0 0.0
    %v234 = vand.u32 %v70, 4294901760
    %235 = vmatmul.mubr.f32.gmra.mxu0 %v234
    %v236 = vpop.f32.mrf.mxu0
    %v237 = vadd.f32 %v151, %v236
    %v238 = vpop.f32.mrf.mxu0
    %239 = vdwg.mxu0
    %240 = vmatprep.subr.mxu0 0.0
    %241 = vmatpush1.msra.mxu0 0.0
    %242 = vmatprep.subr.mxu0 0.0
    %243 = vmatpush1.msra.mxu0 0.0
    %244 = vmatprep.subr.mxu0 0.0
    %245 = vmatpush1.msra.mxu0 0.0
    %246 = vmatprep.subr.mxu0 0.0
    %247 = vmatpush1.msra.mxu0 0.0
    %248 = vmatprep.subr.mxu0 0.0
    %249 = vmatpush1.msra.mxu0 0.0
    %250 = vmatprep.subr.mxu0 0.0
    %251 = vmatpush1.msra.mxu0 0.0
    %252 = vmatprep.subr.mxu0 0.0
    %253 = vmatpush1.msra.mxu0 0.0
    %254 = vmatprep.subr.mxu0 0.0
    %255 = vmatpush1.msra.mxu0 0.0
    %256 = vmatprep.subr.mxu0 0.0
    %257 = vmatpush1.msra.mxu0 0.0
    %258 = vmatprep.subr.mxu0 0.0
    %259 = vmatpush1.msra.mxu0 0.0
    %260 = vmatprep.subr.mxu0 0.0
    %261 = vmatpush1.msra.mxu0 0.0
    %262 = vmatprep.subr.mxu0 0.0
    %263 = vmatpush1.msra.mxu0 0.0
    %264 = vmatprep.subr.mxu0 0.0
    %265 = vmatpush1.msra.mxu0 0.0
    %266 = vmatprep.subr.mxu0 0.0
    %v267 = vand.u32 %v74, 4294901760
    %v268 = vsub.f32 %v74, %v267
    %269 = vmatpush1.msra.mxu0 %v268
    %270 = vmatprep.subr.mxu0 0.0
    %v271 = vand.u32 %v59, 4294901760
    %v272 = vsub.f32 %v59, %v271
    %273 = vmatpush1.msra.mxu0 %v272
    %274 = vmatprep.subr.mxu0 0.0
    %v275 = vand.u32 %v58, 4294901760
    %v276 = vsub.f32 %v58, %v275
    %277 = vmatpush1.msra.mxu0 %v276
    %278 = vmatprep.subr.mxu0 0.0
    %279 = vmatpush2.msra.mxu0 0.0
    %280 = vmatprep.subr.mxu0 0.0
    %281 = vmatpush2.msra.mxu0 0.0
    %282 = vmatprep.subr.mxu0 0.0
    %283 = vmatpush2.msra.mxu0 0.0
    %284 = vmatprep.subr.mxu0 0.0
    %285 = vmatpush2.msra.mxu0 0.0
    %286 = vmatprep.subr.mxu0 0.0
    %287 = vmatpush2.msra.mxu0 0.0
    %288 = vmatprep.subr.mxu0 0.0
    %289 = vmatpush2.msra.mxu0 0.0
    %290 = vmatprep.subr.mxu0 0.0
    %291 = vmatpush2.msra.mxu0 0.0
    %292 = vmatprep.subr.mxu0 0.0
    %293 = vmatpush2.msra.mxu0 0.0
    %294 = vmatprep.subr.mxu0 0.0
    %295 = vmatpush2.msra.mxu0 0.0
    %296 = vmatprep.subr.mxu0 0.0
    %297 = vmatpush2.msra.mxu0 0.0
    %298 = vmatprep.subr.mxu0 0.0
    %299 = vmatpush2.msra.mxu0 0.0
    %300 = vmatprep.subr.mxu0 0.0
    %301 = vmatpush2.msra.mxu0 0.0
    %302 = vmatprep.subr.mxu0 0.0
    %303 = vmatpush2.msra.mxu0 0.0
    %304 = vmatprep.subr.mxu0 0.0
    %305 = vmatpush2.msra.mxu0 0.0
    %306 = vmatprep.subr.mxu0 0.0
    %307 = vmatpush2.msra.mxu0 0.0
    %308 = vmatprep.subr.mxu0 0.0
    %309 = vmatpush2.msra.mxu0 0.0
    %310 = vmatprep.mubr.f32.mxu0 0.0
    %v311 = vand.u32 %v70, 4294901760
    %v312 = vsub.f32 %v70, %v311
    %313 = vmatmul.mubr.f32.gmra.mxu0 %v312
    %v314 = vpop.f32.mrf.mxu0
    %v315 = vadd.f32 %v237, %v314
    %v316 = vpop.f32.mrf.mxu0
    %317 = vdwg.mxu0
    %318 = vmatprep.subr.mxu0 0.0
    %319 = vmatpush1.msra.mxu0 0.0
    %320 = vmatprep.subr.mxu0 0.0
    %321 = vmatpush1.msra.mxu0 0.0
    %322 = vmatprep.subr.mxu0 0.0
    %323 = vmatpush1.msra.mxu0 0.0
    %324 = vmatprep.subr.mxu0 0.0
    %325 = vmatpush1.msra.mxu0 0.0
    %326 = vmatprep.subr.mxu0 0.0
    %327 = vmatpush1.msra.mxu0 0.0
    %328 = vmatprep.subr.mxu0 0.0
    %329 = vmatpush1.msra.mxu0 0.0
    %330 = vmatprep.subr.mxu0 0.0
    %331 = vmatpush1.msra.mxu0 0.0
    %332 = vmatprep.subr.mxu0 0.0
    %333 = vmatpush1.msra.mxu0 0.0
    %334 = vmatprep.subr.mxu0 0.0
    %335 = vmatpush1.msra.mxu0 0.0
    %336 = vmatprep.subr.mxu0 0.0
    %337 = vmatpush1.msra.mxu0 0.0
    %338 = vmatprep.subr.mxu0 0.0
    %339 = vmatpush1.msra.mxu0 0.0
    %340 = vmatprep.subr.mxu0 0.0
    %341 = vmatpush1.msra.mxu0 0.0
    %342 = vmatprep.subr.mxu0 0.0
    %343 = vmatpush1.msra.mxu0 0.0
    %344 = vmatprep.subr.mxu0 0.0
    %v345 = vand.u32 %v74, 4294901760
    %346 = vmatpush1.msra.mxu0 %v345
    %347 = vmatprep.subr.mxu0 0.0
    %v348 = vand.u32 %v59, 4294901760
    %349 = vmatpush1.msra.mxu0 %v348
    %350 = vmatprep.subr.mxu0 0.0
    %v351 = vand.u32 %v58, 4294901760
    %352 = vmatpush1.msra.mxu0 %v351
    %353 = vmatprep.subr.mxu0 0.0
    %354 = vmatpush2.msra.mxu0 0.0
    %355 = vmatprep.subr.mxu0 0.0
    %356 = vmatpush2.msra.mxu0 0.0
    %357 = vmatprep.subr.mxu0 0.0
    %358 = vmatpush2.msra.mxu0 0.0
    %359 = vmatprep.subr.mxu0 0.0
    %360 = vmatpush2.msra.mxu0 0.0
    %361 = vmatprep.subr.mxu0 0.0
    %362 = vmatpush2.msra.mxu0 0.0
    %363 = vmatprep.subr.mxu0 0.0
    %364 = vmatpush2.msra.mxu0 0.0
    %365 = vmatprep.subr.mxu0 0.0
    %366 = vmatpush2.msra.mxu0 0.0
    %367 = vmatprep.subr.mxu0 0.0
    %368 = vmatpush2.msra.mxu0 0.0
    %369 = vmatprep.subr.mxu0 0.0
    %370 = vmatpush2.msra.mxu0 0.0
    %371 = vmatprep.subr.mxu0 0.0
    %372 = vmatpush2.msra.mxu0 0.0
    %373 = vmatprep.subr.mxu0 0.0
    %374 = vmatpush2.msra.mxu0 0.0
    %375 = vmatprep.subr.mxu0 0.0
    %376 = vmatpush2.msra.mxu0 0.0
    %377 = vmatprep.subr.mxu0 0.0
    %378 = vmatpush2.msra.mxu0 0.0
    %379 = vmatprep.subr.mxu0 0.0
    %380 = vmatpush2.msra.mxu0 0.0
    %381 = vmatprep.subr.mxu0 0.0
    %382 = vmatpush2.msra.mxu0 0.0
    %383 = vmatprep.subr.mxu0 0.0
    %384 = vmatpush2.msra.mxu0 0.0
    %385 = vmatprep.mubr.f32.mxu0 0.0
    %v386 = vand.u32 %v70, 4294901760
    %v387 = vsub.f32 %v70, %v386
    %v388 = vand.u32 %v387, 4294901760
    %389 = vmatmul.mubr.f32.gmra.mxu0 %v388
    %v390 = vpop.f32.mrf.mxu0
    %v391 = vadd.f32 %v315, %v390
    %v392 = vpop.f32.mrf.mxu0
    %393 = vdwg.mxu0
    %394 = vmatprep.subr.mxu0 0.0
    %395 = vmatpush1.msra.mxu0 0.0
    %396 = vmatprep.subr.mxu0 0.0
    %397 = vmatpush1.msra.mxu0 0.0
    %398 = vmatprep.subr.mxu0 0.0
    %399 = vmatpush1.msra.mxu0 0.0
    %400 = vmatprep.subr.mxu0 0.0
    %401 = vmatpush1.msra.mxu0 0.0
    %402 = vmatprep.subr.mxu0 0.0
    %403 = vmatpush1.msra.mxu0 0.0
    %404 = vmatprep.subr.mxu0 0.0
    %405 = vmatpush1.msra.mxu0 0.0
    %406 = vmatprep.subr.mxu0 0.0
    %407 = vmatpush1.msra.mxu0 0.0
    %408 = vmatprep.subr.mxu0 0.0
    %409 = vmatpush1.msra.mxu0 0.0
    %410 = vmatprep.subr.mxu0 0.0
    %411 = vmatpush1.msra.mxu0 0.0
    %412 = vmatprep.subr.mxu0 0.0
    %413 = vmatpush1.msra.mxu0 0.0
    %414 = vmatprep.subr.mxu0 0.0
    %415 = vmatpush1.msra.mxu0 0.0
    %416 = vmatprep.subr.mxu0 0.0
    %417 = vmatpush1.msra.mxu0 0.0
    %418 = vmatprep.subr.mxu0 0.0
    %419 = vmatpush1.msra.mxu0 0.0
    %420 = vmatprep.subr.mxu0 0.0
    %v421 = vand.u32 %v74, 4294901760
    %v422 = vsub.f32 %v74, %v421
    %v423 = vand.u32 %v422, 4294901760
    %424 = vmatpush1.msra.mxu0 %v423
    %425 = vmatprep.subr.mxu0 0.0
    %v426 = vand.u32 %v59, 4294901760
    %v427 = vsub.f32 %v59, %v426
    %v428 = vand.u32 %v427, 4294901760
    %429 = vmatpush1.msra.mxu0 %v428
    %430 = vmatprep.subr.mxu0 0.0
    %v431 = vand.u32 %v58, 4294901760
    %v432 = vsub.f32 %v58, %v431
    %v433 = vand.u32 %v432, 4294901760
    %434 = vmatpush1.msra.mxu0 %v433
    %435 = vmatprep.subr.mxu0 0.0
    %436 = vmatpush2.msra.mxu0 0.0
    %437 = vmatprep.subr.mxu0 0.0
    %438 = vmatpush2.msra.mxu0 0.0
    %439 = vmatprep.subr.mxu0 0.0
    %440 = vmatpush2.msra.mxu0 0.0
    %441 = vmatprep.subr.mxu0 0.0
    %442 = vmatpush2.msra.mxu0 0.0
    %443 = vmatprep.subr.mxu0 0.0
    %444 = vmatpush2.msra.mxu0 0.0
    %445 = vmatprep.subr.mxu0 0.0
    %446 = vmatpush2.msra.mxu0 0.0
    %447 = vmatprep.subr.mxu0 0.0
    %448 = vmatpush2.msra.mxu0 0.0
    %449 = vmatprep.subr.mxu0 0.0
    %450 = vmatpush2.msra.mxu0 0.0
    %451 = vmatprep.subr.mxu0 0.0
    %452 = vmatpush2.msra.mxu0 0.0
    %453 = vmatprep.subr.mxu0 0.0
    %454 = vmatpush2.msra.mxu0 0.0
    %455 = vmatprep.subr.mxu0 0.0
    %456 = vmatpush2.msra.mxu0 0.0
    %457 = vmatprep.subr.mxu0 0.0
    %458 = vmatpush2.msra.mxu0 0.0
    %459 = vmatprep.subr.mxu0 0.0
    %460 = vmatpush2.msra.mxu0 0.0
    %461 = vmatprep.subr.mxu0 0.0
    %462 = vmatpush2.msra.mxu0 0.0
    %463 = vmatprep.subr.mxu0 0.0
    %464 = vmatpush2.msra.mxu0 0.0
    %465 = vmatprep.subr.mxu0 0.0
    %466 = vmatpush2.msra.mxu0 0.0
    %467 = vmatprep.mubr.f32.mxu0 0.0
    %v468 = vand.u32 %v70, 4294901760
    %469 = vmatmul.mubr.f32.gmra.mxu0 %v468
    %v470 = vpop.f32.mrf.mxu0
    %v471 = vadd.f32 %v391, %v470
    %v472 = vpop.f32.mrf.mxu0
    %473 = vdwg.mxu0
    %474 = vmatprep.subr.mxu0 0.0
    %475 = vmatpush1.msra.mxu0 0.0
    %476 = vmatprep.subr.mxu0 0.0
    %477 = vmatpush1.msra.mxu0 0.0
    %478 = vmatprep.subr.mxu0 0.0
    %479 = vmatpush1.msra.mxu0 0.0
    %480 = vmatprep.subr.mxu0 0.0
    %481 = vmatpush1.msra.mxu0 0.0
    %482 = vmatprep.subr.mxu0 0.0
    %483 = vmatpush1.msra.mxu0 0.0
    %484 = vmatprep.subr.mxu0 0.0
    %485 = vmatpush1.msra.mxu0 0.0
    %486 = vmatprep.subr.mxu0 0.0
    %487 = vmatpush1.msra.mxu0 0.0
    %488 = vmatprep.subr.mxu0 0.0
    %489 = vmatpush1.msra.mxu0 0.0
    %490 = vmatprep.subr.mxu0 0.0
    %491 = vmatpush1.msra.mxu0 0.0
    %492 = vmatprep.subr.mxu0 0.0
    %493 = vmatpush1.msra.mxu0 0.0
    %494 = vmatprep.subr.mxu0 0.0
    %495 = vmatpush1.msra.mxu0 0.0
    %496 = vmatprep.subr.mxu0 0.0
    %497 = vmatpush1.msra.mxu0 0.0
    %498 = vmatprep.subr.mxu0 0.0
    %499 = vmatpush1.msra.mxu0 0.0
    %500 = vmatprep.subr.mxu0 0.0
    %v501 = vand.u32 %v74, 4294901760
    %502 = vmatpush1.msra.mxu0 %v501
    %503 = vmatprep.subr.mxu0 0.0
    %v504 = vand.u32 %v59, 4294901760
    %505 = vmatpush1.msra.mxu0 %v504
    %506 = vmatprep.subr.mxu0 0.0
    %v507 = vand.u32 %v58, 4294901760
    %508 = vmatpush1.msra.mxu0 %v507
    %509 = vmatprep.subr.mxu0 0.0
    %510 = vmatpush2.msra.mxu0 0.0
    %511 = vmatprep.subr.mxu0 0.0
    %512 = vmatpush2.msra.mxu0 0.0
    %513 = vmatprep.subr.mxu0 0.0
    %514 = vmatpush2.msra.mxu0 0.0
    %515 = vmatprep.subr.mxu0 0.0
    %516 = vmatpush2.msra.mxu0 0.0
    %517 = vmatprep.subr.mxu0 0.0
    %518 = vmatpush2.msra.mxu0 0.0
    %519 = vmatprep.subr.mxu0 0.0
    %520 = vmatpush2.msra.mxu0 0.0
    %521 = vmatprep.subr.mxu0 0.0
    %522 = vmatpush2.msra.mxu0 0.0
    %523 = vmatprep.subr.mxu0 0.0
    %524 = vmatpush2.msra.mxu0 0.0
    %525 = vmatprep.subr.mxu0 0.0
    %526 = vmatpush2.msra.mxu0 0.0
    %527 = vmatprep.subr.mxu0 0.0
    %528 = vmatpush2.msra.mxu0 0.0
    %529 = vmatprep.subr.mxu0 0.0
    %530 = vmatpush2.msra.mxu0 0.0
    %531 = vmatprep.subr.mxu0 0.0
    %532 = vmatpush2.msra.mxu0 0.0
    %533 = vmatprep.subr.mxu0 0.0
    %534 = vmatpush2.msra.mxu0 0.0
    %535 = vmatprep.subr.mxu0 0.0
    %536 = vmatpush2.msra.mxu0 0.0
    %537 = vmatprep.subr.mxu0 0.0
    %538 = vmatpush2.msra.mxu0 0.0
    %539 = vmatprep.subr.mxu0 0.0
    %540 = vmatpush2.msra.mxu0 0.0
    %541 = vmatprep.mubr.f32.mxu0 0.0
    %v542 = vand.u32 %v70, 4294901760
    %543 = vmatmul.mubr.f32.gmra.mxu0 %v542
    %v544 = vpop.f32.mrf.mxu0
    %v545 = vadd.f32 %v471, %v544
    %v546 = vpop.f32.mrf.mxu0
    %547 = vdwg.mxu0
    %v548 = vmax.f32 %v545, 0.0
    %v549 = vld [vmem:[#allocation6] sm:$0xff]
    %v550 = vld [vmem:[#allocation6 + $0x8] sm:$0xff]
    %v551 = vld [vmem:[#allocation6 + $0x10] sm:$0xff]
    %v552 = vld [vmem:[#allocation6 + $0x18] sm:$0xff]
    %v553 = vld [vmem:[%s4] sm:$0x1]
    %v555 = vlaneseq
    %v556 = vshrl.u32 %v555, 7
    %v557 = vsub.s32 0, %v556
    %v558 = vrot.slane %v553, %v557
    %vm560 = vcmask 261120
    %v562 = vsel %vm560, %v548, 0
    %564 = vmatprep.subr.mxu0 0.0
    %565 = vmatpush1.msra.mxu0 0.0
    %566 = vmatprep.subr.mxu0 0.0
    %567 = vmatpush1.msra.mxu0 0.0
    %568 = vmatprep.subr.mxu0 0.0
    %569 = vmatpush1.msra.mxu0 0.0
    %570 = vmatprep.subr.mxu0 0.0
    %571 = vmatpush1.msra.mxu0 0.0
    %572 = vmatprep.subr.mxu0 0.0
    %573 = vmatpush1.msra.mxu0 0.0
    %574 = vmatprep.subr.mxu0 0.0
    %575 = vmatpush1.msra.mxu0 0.0
    %576 = vmatprep.subr.mxu0 0.0
    %577 = vmatpush1.msra.mxu0 0.0
    %578 = vmatprep.subr.mxu0 0.0
    %579 = vmatpush1.msra.mxu0 0.0
    %580 = vmatprep.subr.mxu0 0.0
    %581 = vmatpush1.msra.mxu0 0.0
    %582 = vmatprep.subr.mxu0 0.0
    %583 = vmatpush1.msra.mxu0 0.0
    %584 = vmatprep.subr.mxu0 0.0
    %585 = vmatpush1.msra.mxu0 0.0
    %586 = vmatprep.subr.mxu0 0.0
    %587 = vmatpush1.msra.mxu0 0.0
    %588 = vmatprep.subr.mxu0 0.0
    %v589 = vand.u32 %v552, 4294901760
    %590 = vmatpush1.msra.mxu0 %v589
    %591 = vmatprep.subr.mxu0 0.0
    %v592 = vand.u32 %v551, 4294901760
    %593 = vmatpush1.msra.mxu0 %v592
    %594 = vmatprep.subr.mxu0 0.0
    %v595 = vand.u32 %v550, 4294901760
    %596 = vmatpush1.msra.mxu0 %v595
    %597 = vmatprep.subr.mxu0 0.0
    %v598 = vand.u32 %v549, 4294901760
    %599 = vmatpush1.msra.mxu0 %v598
    %600 = vmatprep.subr.mxu0 0.0
    %601 = vmatpush2.msra.mxu0 0.0
    %602 = vmatprep.subr.mxu0 0.0
    %603 = vmatpush2.msra.mxu0 0.0
    %604 = vmatprep.subr.mxu0 0.0
    %605 = vmatpush2.msra.mxu0 0.0
    %606 = vmatprep.subr.mxu0 0.0
    %607 = vmatpush2.msra.mxu0 0.0
    %608 = vmatprep.subr.mxu0 0.0
    %609 = vmatpush2.msra.mxu0 0.0
    %610 = vmatprep.subr.mxu0 0.0
    %611 = vmatpush2.msra.mxu0 0.0
    %612 = vmatprep.subr.mxu0 0.0
    %613 = vmatpush2.msra.mxu0 0.0
    %614 = vmatprep.subr.mxu0 0.0
    %615 = vmatpush2.msra.mxu0 0.0
    %616 = vmatprep.subr.mxu0 0.0
    %617 = vmatpush2.msra.mxu0 0.0
    %618 = vmatprep.subr.mxu0 0.0
    %619 = vmatpush2.msra.mxu0 0.0
    %620 = vmatprep.subr.mxu0 0.0
    %621 = vmatpush2.msra.mxu0 0.0
    %622 = vmatprep.subr.mxu0 0.0
    %623 = vmatpush2.msra.mxu0 0.0
    %624 = vmatprep.subr.mxu0 0.0
    %625 = vmatpush2.msra.mxu0 0.0
    %626 = vmatprep.subr.mxu0 0.0
    %627 = vmatpush2.msra.mxu0 0.0
    %628 = vmatprep.subr.mxu0 0.0
    %629 = vmatpush2.msra.mxu0 0.0
    %630 = vmatprep.subr.mxu0 0.0
    %631 = vmatpush2.msra.mxu0 0.0
    %632 = vmatprep.mubr.f32.mxu0 0.0
    %v633 = vand.u32 %v562, 4294901760
    %v634 = vsub.f32 %v562, %v633
    %v635 = vand.u32 %v634, 4294901760
    %v636 = vsub.f32 %v634, %v635
    %v637 = vand.u32 %v636, 4294901760
    %638 = vmatmul.mubr.f32.gmra.mxu0 %v637
    %v639 = vpop.f32.mrf.mxu0
    %v640 = vadd.f32 %v558, %v639
    %v641 = vpop.f32.mrf.mxu0
    %642 = vdwg.mxu0
    %643 = vmatprep.subr.mxu0 0.0
    %644 = vmatpush1.msra.mxu0 0.0
    %645 = vmatprep.subr.mxu0 0.0
    %646 = vmatpush1.msra.mxu0 0.0
    %647 = vmatprep.subr.mxu0 0.0
    %648 = vmatpush1.msra.mxu0 0.0
    %649 = vmatprep.subr.mxu0 0.0
    %650 = vmatpush1.msra.mxu0 0.0
    %651 = vmatprep.subr.mxu0 0.0
    %652 = vmatpush1.msra.mxu0 0.0
    %653 = vmatprep.subr.mxu0 0.0
    %654 = vmatpush1.msra.mxu0 0.0
    %655 = vmatprep.subr.mxu0 0.0
    %656 = vmatpush1.msra.mxu0 0.0
    %657 = vmatprep.subr.mxu0 0.0
    %658 = vmatpush1.msra.mxu0 0.0
    %659 = vmatprep.subr.mxu0 0.0
    %660 = vmatpush1.msra.mxu0 0.0
    %661 = vmatprep.subr.mxu0 0.0
    %662 = vmatpush1.msra.mxu0 0.0
    %663 = vmatprep.subr.mxu0 0.0
    %664 = vmatpush1.msra.mxu0 0.0
    %665 = vmatprep.subr.mxu0 0.0
    %666 = vmatpush1.msra.mxu0 0.0
    %667 = vmatprep.subr.mxu0 0.0
    %v668 = vand.u32 %v552, 4294901760
    %v669 = vsub.f32 %v552, %v668
    %v670 = vand.u32 %v669, 4294901760
    %v671 = vsub.f32 %v669, %v670
    %v672 = vand.u32 %v671, 4294901760
    %673 = vmatpush1.msra.mxu0 %v672
    %674 = vmatprep.subr.mxu0 0.0
    %v675 = vand.u32 %v551, 4294901760
    %v676 = vsub.f32 %v551, %v675
    %v677 = vand.u32 %v676, 4294901760
    %v678 = vsub.f32 %v676, %v677
    %v679 = vand.u32 %v678, 4294901760
    %680 = vmatpush1.msra.mxu0 %v679
    %681 = vmatprep.subr.mxu0 0.0
    %v682 = vand.u32 %v550, 4294901760
    %v683 = vsub.f32 %v550, %v682
    %v684 = vand.u32 %v683, 4294901760
    %v685 = vsub.f32 %v683, %v684
    %v686 = vand.u32 %v685, 4294901760
    %687 = vmatpush1.msra.mxu0 %v686
    %688 = vmatprep.subr.mxu0 0.0
    %v689 = vand.u32 %v549, 4294901760
    %v690 = vsub.f32 %v549, %v689
    %v691 = vand.u32 %v690, 4294901760
    %v692 = vsub.f32 %v690, %v691
    %v693 = vand.u32 %v692, 4294901760
    %694 = vmatpush1.msra.mxu0 %v693
    %695 = vmatprep.subr.mxu0 0.0
    %696 = vmatpush2.msra.mxu0 0.0
    %697 = vmatprep.subr.mxu0 0.0
    %698 = vmatpush2.msra.mxu0 0.0
    %699 = vmatprep.subr.mxu0 0.0
    %700 = vmatpush2.msra.mxu0 0.0
    %701 = vmatprep.subr.mxu0 0.0
    %702 = vmatpush2.msra.mxu0 0.0
    %703 = vmatprep.subr.mxu0 0.0
    %704 = vmatpush2.msra.mxu0 0.0
    %705 = vmatprep.subr.mxu0 0.0
    %706 = vmatpush2.msra.mxu0 0.0
    %707 = vmatprep.subr.mxu0 0.0
    %708 = vmatpush2.msra.mxu0 0.0
    %709 = vmatprep.subr.mxu0 0.0
    %710 = vmatpush2.msra.mxu0 0.0
    %711 = vmatprep.subr.mxu0 0.0
    %712 = vmatpush2.msra.mxu0 0.0
    %713 = vmatprep.subr.mxu0 0.0
    %714 = vmatpush2.msra.mxu0 0.0
    %715 = vmatprep.subr.mxu0 0.0
    %716 = vmatpush2.msra.mxu0 0.0
    %717 = vmatprep.subr.mxu0 0.0
    %718 = vmatpush2.msra.mxu0 0.0
    %719 = vmatprep.subr.mxu0 0.0
    %720 = vmatpush2.msra.mxu0 0.0
    %721 = vmatprep.subr.mxu0 0.0
    %722 = vmatpush2.msra.mxu0 0.0
    %723 = vmatprep.subr.mxu0 0.0
    %724 = vmatpush2.msra.mxu0 0.0
    %725 = vmatprep.subr.mxu0 0.0
    %726 = vmatpush2.msra.mxu0 0.0
    %727 = vmatprep.mubr.f32.mxu0 0.0
    %v728 = vand.u32 %v562, 4294901760
    %729 = vmatmul.mubr.f32.gmra.mxu0 %v728
    %v730 = vpop.f32.mrf.mxu0
    %v731 = vadd.f32 %v640, %v730
    %v732 = vpop.f32.mrf.mxu0
    %733 = vdwg.mxu0
    %734 = vmatprep.subr.mxu0 0.0
    %735 = vmatpush1.msra.mxu0 0.0
    %736 = vmatprep.subr.mxu0 0.0
    %737 = vmatpush1.msra.mxu0 0.0
    %738 = vmatprep.subr.mxu0 0.0
    %739 = vmatpush1.msra.mxu0 0.0
    %740 = vmatprep.subr.mxu0 0.0
    %741 = vmatpush1.msra.mxu0 0.0
    %742 = vmatprep.subr.mxu0 0.0
    %743 = vmatpush1.msra.mxu0 0.0
    %744 = vmatprep.subr.mxu0 0.0
    %745 = vmatpush1.msra.mxu0 0.0
    %746 = vmatprep.subr.mxu0 0.0
    %747 = vmatpush1.msra.mxu0 0.0
    %748 = vmatprep.subr.mxu0 0.0
    %749 = vmatpush1.msra.mxu0 0.0
    %750 = vmatprep.subr.mxu0 0.0
    %751 = vmatpush1.msra.mxu0 0.0
    %752 = vmatprep.subr.mxu0 0.0
    %753 = vmatpush1.msra.mxu0 0.0
    %754 = vmatprep.subr.mxu0 0.0
    %755 = vmatpush1.msra.mxu0 0.0
    %756 = vmatprep.subr.mxu0 0.0
    %757 = vmatpush1.msra.mxu0 0.0
    %758 = vmatprep.subr.mxu0 0.0
    %v759 = vand.u32 %v552, 4294901760
    %v760 = vsub.f32 %v552, %v759
    %761 = vmatpush1.msra.mxu0 %v760
    %762 = vmatprep.subr.mxu0 0.0
    %v763 = vand.u32 %v551, 4294901760
    %v764 = vsub.f32 %v551, %v763
    %765 = vmatpush1.msra.mxu0 %v764
    %766 = vmatprep.subr.mxu0 0.0
    %v767 = vand.u32 %v550, 4294901760
    %v768 = vsub.f32 %v550, %v767
    %769 = vmatpush1.msra.mxu0 %v768
    %770 = vmatprep.subr.mxu0 0.0
    %v771 = vand.u32 %v549, 4294901760
    %v772 = vsub.f32 %v549, %v771
    %773 = vmatpush1.msra.mxu0 %v772
    %774 = vmatprep.subr.mxu0 0.0
    %775 = vmatpush2.msra.mxu0 0.0
    %776 = vmatprep.subr.mxu0 0.0
    %777 = vmatpush2.msra.mxu0 0.0
    %778 = vmatprep.subr.mxu0 0.0
    %779 = vmatpush2.msra.mxu0 0.0
    %780 = vmatprep.subr.mxu0 0.0
    %781 = vmatpush2.msra.mxu0 0.0
    %782 = vmatprep.subr.mxu0 0.0
    %783 = vmatpush2.msra.mxu0 0.0
    %784 = vmatprep.subr.mxu0 0.0
    %785 = vmatpush2.msra.mxu0 0.0
    %786 = vmatprep.subr.mxu0 0.0
    %787 = vmatpush2.msra.mxu0 0.0
    %788 = vmatprep.subr.mxu0 0.0
    %789 = vmatpush2.msra.mxu0 0.0
    %790 = vmatprep.subr.mxu0 0.0
    %791 = vmatpush2.msra.mxu0 0.0
    %792 = vmatprep.subr.mxu0 0.0
    %793 = vmatpush2.msra.mxu0 0.0
    %794 = vmatprep.subr.mxu0 0.0
    %795 = vmatpush2.msra.mxu0 0.0
    %796 = vmatprep.subr.mxu0 0.0
    %797 = vmatpush2.msra.mxu0 0.0
    %798 = vmatprep.subr.mxu0 0.0
    %799 = vmatpush2.msra.mxu0 0.0
    %800 = vmatprep.subr.mxu0 0.0
    %801 = vmatpush2.msra.mxu0 0.0
    %802 = vmatprep.subr.mxu0 0.0
    %803 = vmatpush2.msra.mxu0 0.0
    %804 = vmatprep.subr.mxu0 0.0
    %805 = vmatpush2.msra.mxu0 0.0
    %806 = vmatprep.mubr.f32.mxu0 0.0
    %v807 = vand.u32 %v562, 4294901760
    %v808 = vsub.f32 %v562, %v807
    %809 = vmatmul.mubr.f32.gmra.mxu0 %v808
    %v810 = vpop.f32.mrf.mxu0
    %v811 = vadd.f32 %v731, %v810
    %v812 = vpop.f32.mrf.mxu0
    %813 = vdwg.mxu0
    %814 = vmatprep.subr.mxu0 0.0
    %815 = vmatpush1.msra.mxu0 0.0
    %816 = vmatprep.subr.mxu0 0.0
    %817 = vmatpush1.msra.mxu0 0.0
    %818 = vmatprep.subr.mxu0 0.0
    %819 = vmatpush1.msra.mxu0 0.0
    %820 = vmatprep.subr.mxu0 0.0
    %821 = vmatpush1.msra.mxu0 0.0
    %822 = vmatprep.subr.mxu0 0.0
    %823 = vmatpush1.msra.mxu0 0.0
    %824 = vmatprep.subr.mxu0 0.0
    %825 = vmatpush1.msra.mxu0 0.0
    %826 = vmatprep.subr.mxu0 0.0
    %827 = vmatpush1.msra.mxu0 0.0
    %828 = vmatprep.subr.mxu0 0.0
    %829 = vmatpush1.msra.mxu0 0.0
    %830 = vmatprep.subr.mxu0 0.0
    %831 = vmatpush1.msra.mxu0 0.0
    %832 = vmatprep.subr.mxu0 0.0
    %833 = vmatpush1.msra.mxu0 0.0
    %834 = vmatprep.subr.mxu0 0.0
    %835 = vmatpush1.msra.mxu0 0.0
    %836 = vmatprep.subr.mxu0 0.0
    %837 = vmatpush1.msra.mxu0 0.0
    %838 = vmatprep.subr.mxu0 0.0
    %v839 = vand.u32 %v552, 4294901760
    %840 = vmatpush1.msra.mxu0 %v839
    %841 = vmatprep.subr.mxu0 0.0
    %v842 = vand.u32 %v551, 4294901760
    %843 = vmatpush1.msra.mxu0 %v842
    %844 = vmatprep.subr.mxu0 0.0
    %v845 = vand.u32 %v550, 4294901760
    %846 = vmatpush1.msra.mxu0 %v845
    %847 = vmatprep.subr.mxu0 0.0
    %v848 = vand.u32 %v549, 4294901760
    %849 = vmatpush1.msra.mxu0 %v848
    %850 = vmatprep.subr.mxu0 0.0
    %851 = vmatpush2.msra.mxu0 0.0
    %852 = vmatprep.subr.mxu0 0.0
    %853 = vmatpush2.msra.mxu0 0.0
    %854 = vmatprep.subr.mxu0 0.0
    %855 = vmatpush2.msra.mxu0 0.0
    %856 = vmatprep.subr.mxu0 0.0
    %857 = vmatpush2.msra.mxu0 0.0
    %858 = vmatprep.subr.mxu0 0.0
    %859 = vmatpush2.msra.mxu0 0.0
    %860 = vmatprep.subr.mxu0 0.0
    %861 = vmatpush2.msra.mxu0 0.0
    %862 = vmatprep.subr.mxu0 0.0
    %863 = vmatpush2.msra.mxu0 0.0
    %864 = vmatprep.subr.mxu0 0.0
    %865 = vmatpush2.msra.mxu0 0.0
    %866 = vmatprep.subr.mxu0 0.0
    %867 = vmatpush2.msra.mxu0 0.0
    %868 = vmatprep.subr.mxu0 0.0
    %869 = vmatpush2.msra.mxu0 0.0
    %870 = vmatprep.subr.mxu0 0.0
    %871 = vmatpush2.msra.mxu0 0.0
    %872 = vmatprep.subr.mxu0 0.0
    %873 = vmatpush2.msra.mxu0 0.0
    %874 = vmatprep.subr.mxu0 0.0
    %875 = vmatpush2.msra.mxu0 0.0
    %876 = vmatprep.subr.mxu0 0.0
    %877 = vmatpush2.msra.mxu0 0.0
    %878 = vmatprep.subr.mxu0 0.0
    %879 = vmatpush2.msra.mxu0 0.0
    %880 = vmatprep.subr.mxu0 0.0
    %881 = vmatpush2.msra.mxu0 0.0
    %882 = vmatprep.mubr.f32.mxu0 0.0
    %v883 = vand.u32 %v562, 4294901760
    %v884 = vsub.f32 %v562, %v883
    %v885 = vand.u32 %v884, 4294901760
    %886 = vmatmul.mubr.f32.gmra.mxu0 %v885
    %v887 = vpop.f32.mrf.mxu0
    %v888 = vadd.f32 %v811, %v887
    %v889 = vpop.f32.mrf.mxu0
    %890 = vdwg.mxu0
    %891 = vmatprep.subr.mxu0 0.0
    %892 = vmatpush1.msra.mxu0 0.0
    %893 = vmatprep.subr.mxu0 0.0
    %894 = vmatpush1.msra.mxu0 0.0
    %895 = vmatprep.subr.mxu0 0.0
    %896 = vmatpush1.msra.mxu0 0.0
    %897 = vmatprep.subr.mxu0 0.0
    %898 = vmatpush1.msra.mxu0 0.0
    %899 = vmatprep.subr.mxu0 0.0
    %900 = vmatpush1.msra.mxu0 0.0
    %901 = vmatprep.subr.mxu0 0.0
    %902 = vmatpush1.msra.mxu0 0.0
    %903 = vmatprep.subr.mxu0 0.0
    %904 = vmatpush1.msra.mxu0 0.0
    %905 = vmatprep.subr.mxu0 0.0
    %906 = vmatpush1.msra.mxu0 0.0
    %907 = vmatprep.subr.mxu0 0.0
    %908 = vmatpush1.msra.mxu0 0.0
    %909 = vmatprep.subr.mxu0 0.0
    %910 = vmatpush1.msra.mxu0 0.0
    %911 = vmatprep.subr.mxu0 0.0
    %912 = vmatpush1.msra.mxu0 0.0
    %913 = vmatprep.subr.mxu0 0.0
    %914 = vmatpush1.msra.mxu0 0.0
    %915 = vmatprep.subr.mxu0 0.0
    %v916 = vand.u32 %v552, 4294901760
    %v917 = vsub.f32 %v552, %v916
    %v918 = vand.u32 %v917, 4294901760
    %919 = vmatpush1.msra.mxu0 %v918
    %920 = vmatprep.subr.mxu0 0.0
    %v921 = vand.u32 %v551, 4294901760
    %v922 = vsub.f32 %v551, %v921
    %v923 = vand.u32 %v922, 4294901760
    %924 = vmatpush1.msra.mxu0 %v923
    %925 = vmatprep.subr.mxu0 0.0
    %v926 = vand.u32 %v550, 4294901760
    %v927 = vsub.f32 %v550, %v926
    %v928 = vand.u32 %v927, 4294901760
    %929 = vmatpush1.msra.mxu0 %v928
    %930 = vmatprep.subr.mxu0 0.0
    %v931 = vand.u32 %v549, 4294901760
    %v932 = vsub.f32 %v549, %v931
    %v933 = vand.u32 %v932, 4294901760
    %934 = vmatpush1.msra.mxu0 %v933
    %935 = vmatprep.subr.mxu0 0.0
    %936 = vmatpush2.msra.mxu0 0.0
    %937 = vmatprep.subr.mxu0 0.0
    %938 = vmatpush2.msra.mxu0 0.0
    %939 = vmatprep.subr.mxu0 0.0
    %940 = vmatpush2.msra.mxu0 0.0
    %941 = vmatprep.subr.mxu0 0.0
    %942 = vmatpush2.msra.mxu0 0.0
    %943 = vmatprep.subr.mxu0 0.0
    %944 = vmatpush2.msra.mxu0 0.0
    %945 = vmatprep.subr.mxu0 0.0
    %946 = vmatpush2.msra.mxu0 0.0
    %947 = vmatprep.subr.mxu0 0.0
    %948 = vmatpush2.msra.mxu0 0.0
    %949 = vmatprep.subr.mxu0 0.0
    %950 = vmatpush2.msra.mxu0 0.0
    %951 = vmatprep.subr.mxu0 0.0
    %952 = vmatpush2.msra.mxu0 0.0
    %953 = vmatprep.subr.mxu0 0.0
    %954 = vmatpush2.msra.mxu0 0.0
    %955 = vmatprep.subr.mxu0 0.0
    %956 = vmatpush2.msra.mxu0 0.0
    %957 = vmatprep.subr.mxu0 0.0
    %958 = vmatpush2.msra.mxu0 0.0
    %959 = vmatprep.subr.mxu0 0.0
    %960 = vmatpush2.msra.mxu0 0.0
    %961 = vmatprep.subr.mxu0 0.0
    %962 = vmatpush2.msra.mxu0 0.0
    %963 = vmatprep.subr.mxu0 0.0
    %964 = vmatpush2.msra.mxu0 0.0
    %965 = vmatprep.subr.mxu0 0.0
    %966 = vmatpush2.msra.mxu0 0.0
    %967 = vmatprep.mubr.f32.mxu0 0.0
    %v968 = vand.u32 %v562, 4294901760
    %969 = vmatmul.mubr.f32.gmra.mxu0 %v968
    %v970 = vpop.f32.mrf.mxu0
    %v971 = vadd.f32 %v888, %v970
    %v972 = vpop.f32.mrf.mxu0
    %973 = vdwg.mxu0
    %974 = vmatprep.subr.mxu0 0.0
    %975 = vmatpush1.msra.mxu0 0.0
    %976 = vmatprep.subr.mxu0 0.0
    %977 = vmatpush1.msra.mxu0 0.0
    %978 = vmatprep.subr.mxu0 0.0
    %979 = vmatpush1.msra.mxu0 0.0
    %980 = vmatprep.subr.mxu0 0.0
    %981 = vmatpush1.msra.mxu0 0.0
    %982 = vmatprep.subr.mxu0 0.0
    %983 = vmatpush1.msra.mxu0 0.0
    %984 = vmatprep.subr.mxu0 0.0
    %985 = vmatpush1.msra.mxu0 0.0
    %986 = vmatprep.subr.mxu0 0.0
    %987 = vmatpush1.msra.mxu0 0.0
    %988 = vmatprep.subr.mxu0 0.0
    %989 = vmatpush1.msra.mxu0 0.0
    %990 = vmatprep.subr.mxu0 0.0
    %991 = vmatpush1.msra.mxu0 0.0
    %992 = vmatprep.subr.mxu0 0.0
    %993 = vmatpush1.msra.mxu0 0.0
    %994 = vmatprep.subr.mxu0 0.0
    %995 = vmatpush1.msra.mxu0 0.0
    %996 = vmatprep.subr.mxu0 0.0
    %997 = vmatpush1.msra.mxu0 0.0
    %998 = vmatprep.subr.mxu0 0.0
    %v999 = vand.u32 %v552, 4294901760
    %1000 = vmatpush1.msra.mxu0 %v999
    %1001 = vmatprep.subr.mxu0 0.0
    %v1002 = vand.u32 %v551, 4294901760
    %1003 = vmatpush1.msra.mxu0 %v1002
    %1004 = vmatprep.subr.mxu0 0.0
    %v1005 = vand.u32 %v550, 4294901760
    %1006 = vmatpush1.msra.mxu0 %v1005
    %1007 = vmatprep.subr.mxu0 0.0
    %v1008 = vand.u32 %v549, 4294901760
    %1009 = vmatpush1.msra.mxu0 %v1008
    %1010 = vmatprep.subr.mxu0 0.0
    %1011 = vmatpush2.msra.mxu0 0.0
    %1012 = vmatprep.subr.mxu0 0.0
    %1013 = vmatpush2.msra.mxu0 0.0
    %1014 = vmatprep.subr.mxu0 0.0
    %1015 = vmatpush2.msra.mxu0 0.0
    %1016 = vmatprep.subr.mxu0 0.0
    %1017 = vmatpush2.msra.mxu0 0.0
    %1018 = vmatprep.subr.mxu0 0.0
    %1019 = vmatpush2.msra.mxu0 0.0
    %1020 = vmatprep.subr.mxu0 0.0
    %1021 = vmatpush2.msra.mxu0 0.0
    %1022 = vmatprep.subr.mxu0 0.0
    %1023 = vmatpush2.msra.mxu0 0.0
    %1024 = vmatprep.subr.mxu0 0.0
    %1025 = vmatpush2.msra.mxu0 0.0
    %1026 = vmatprep.subr.mxu0 0.0
    %1027 = vmatpush2.msra.mxu0 0.0
    %1028 = vmatprep.subr.mxu0 0.0
    %1029 = vmatpush2.msra.mxu0 0.0
    %1030 = vmatprep.subr.mxu0 0.0
    %1031 = vmatpush2.msra.mxu0 0.0
    %1032 = vmatprep.subr.mxu0 0.0
    %1033 = vmatpush2.msra.mxu0 0.0
    %1034 = vmatprep.subr.mxu0 0.0
    %1035 = vmatpush2.msra.mxu0 0.0
    %1036 = vmatprep.subr.mxu0 0.0
    %1037 = vmatpush2.msra.mxu0 0.0
    %1038 = vmatprep.subr.mxu0 0.0
    %1039 = vmatpush2.msra.mxu0 0.0
    %1040 = vmatprep.subr.mxu0 0.0
    %1041 = vmatpush2.msra.mxu0 0.0
    %1042 = vmatprep.mubr.f32.mxu0 0.0
    %v1043 = vand.u32 %v562, 4294901760
    %1044 = vmatmul.mubr.f32.gmra.mxu0 %v1043
    %v1045 = vpop.f32.mrf.mxu0
    %v1046 = vadd.f32 %v971, %v1045
    %v1047 = vpop.f32.mrf.mxu0
    %1048 = vdwg.mxu0
    %v1049 = vmax.f32 %v1046, 0.0
    %v1050 = vld [vmem:[%s5] sm:$0x1]
    %v1051 = vld [vmem:[#allocation2] sm:$0x1]
    %1053 = vset.pattern.permute.xlu0 0
    %1054 = vperm.xlu0 %1053, %v1051
    %v1055 = vpop.permute.xlu0 %1054
    %v1057 = vlaneseq
    %v1058 = vshrl.u32 %v1057, 7
    %v1059 = vsub.s32 0, %v1058
    %v1060 = vrot.slane %v1055, %v1059
    %v1062 = vsel %vm560, %v1050, 0
    %v1065 = vsel %vm560, %v1049, 0
    %1067 = vmatprep.subr.mxu0 0.0
    %1068 = vmatpush1.xpose.msra.mxu0 0.0
    %1069 = vmatprep.subr.mxu0 0.0
    %1070 = vmatpush1.xpose.msra.mxu0 0.0
    %1071 = vmatprep.subr.mxu0 0.0
    %1072 = vmatpush1.xpose.msra.mxu0 0.0
    %1073 = vmatprep.subr.mxu0 0.0
    %1074 = vmatpush1.xpose.msra.mxu0 0.0
    %1075 = vmatprep.subr.mxu0 0.0
    %1076 = vmatpush1.xpose.msra.mxu0 0.0
    %1077 = vmatprep.subr.mxu0 0.0
    %1078 = vmatpush1.xpose.msra.mxu0 0.0
    %1079 = vmatprep.subr.mxu0 0.0
    %1080 = vmatpush1.xpose.msra.mxu0 0.0
    %1081 = vmatprep.subr.mxu0 0.0
    %1082 = vmatpush1.xpose.msra.mxu0 0.0
    %1083 = vmatprep.subr.mxu0 0.0
    %1084 = vmatpush1.xpose.msra.mxu0 0.0
    %1085 = vmatprep.subr.mxu0 0.0
    %1086 = vmatpush1.xpose.msra.mxu0 0.0
    %1087 = vmatprep.subr.mxu0 0.0
    %1088 = vmatpush1.xpose.msra.mxu0 0.0
    %1089 = vmatprep.subr.mxu0 0.0
    %1090 = vmatpush1.xpose.msra.mxu0 0.0
    %1091 = vmatprep.subr.mxu0 0.0
    %1092 = vmatpush1.xpose.msra.mxu0 0.0
    %1093 = vmatprep.subr.mxu0 0.0
    %1094 = vmatpush1.xpose.msra.mxu0 0.0
    %1095 = vmatprep.subr.mxu0 0.0
    %1096 = vmatpush1.xpose.msra.mxu0 0.0
    %1097 = vmatprep.subr.mxu0 0.0
    %v1098 = vand.u32 %v1065, 4294901760
    %1099 = vmatpush1.xpose.msra.mxu0 %v1098
    %1100 = vmatprep.subr.mxu0 0.0
    %1101 = vmatpush2.xpose.msra.mxu0 0.0
    %1102 = vmatprep.subr.mxu0 0.0
    %1103 = vmatpush2.xpose.msra.mxu0 0.0
    %1104 = vmatprep.subr.mxu0 0.0
    %1105 = vmatpush2.xpose.msra.mxu0 0.0
    %1106 = vmatprep.subr.mxu0 0.0
    %1107 = vmatpush2.xpose.msra.mxu0 0.0
    %1108 = vmatprep.subr.mxu0 0.0
    %1109 = vmatpush2.xpose.msra.mxu0 0.0
    %1110 = vmatprep.subr.mxu0 0.0
    %1111 = vmatpush2.xpose.msra.mxu0 0.0
    %1112 = vmatprep.subr.mxu0 0.0
    %1113 = vmatpush2.xpose.msra.mxu0 0.0
    %1114 = vmatprep.subr.mxu0 0.0
    %1115 = vmatpush2.xpose.msra.mxu0 0.0
    %1116 = vmatprep.subr.mxu0 0.0
    %1117 = vmatpush2.xpose.msra.mxu0 0.0
    %1118 = vmatprep.subr.mxu0 0.0
    %1119 = vmatpush2.xpose.msra.mxu0 0.0
    %1120 = vmatprep.subr.mxu0 0.0
    %1121 = vmatpush2.xpose.msra.mxu0 0.0
    %1122 = vmatprep.subr.mxu0 0.0
    %1123 = vmatpush2.xpose.msra.mxu0 0.0
    %1124 = vmatprep.subr.mxu0 0.0
    %1125 = vmatpush2.xpose.msra.mxu0 0.0
    %1126 = vmatprep.subr.mxu0 0.0
    %1127 = vmatpush2.xpose.msra.mxu0 0.0
    %1128 = vmatprep.subr.mxu0 0.0
    %1129 = vmatpush2.xpose.msra.mxu0 0.0
    %1130 = vmatprep.subr.mxu0 0.0
    %1131 = vmatpush2.xpose.msra.mxu0 0.0
    %1132 = vmatprep.mubr.f32.mxu0 0.0
    %v1133 = vand.u32 %v1062, 4294901760
    %v1134 = vsub.f32 %v1062, %v1133
    %v1135 = vand.u32 %v1134, 4294901760
    %v1136 = vsub.f32 %v1134, %v1135
    %v1137 = vand.u32 %v1136, 4294901760
    %1138 = vmatmul.mubr.f32.gmra.mxu0 %v1137
    %v1139 = vpop.f32.mrf.mxu0
    %v1140 = vadd.f32 %v1060, %v1139
    %v1141 = vpop.f32.mrf.mxu0
    %1142 = vdwg.mxu0
    %1143 = vmatprep.subr.mxu0 0.0
    %1144 = vmatpush1.xpose.msra.mxu0 0.0
    %1145 = vmatprep.subr.mxu0 0.0
    %1146 = vmatpush1.xpose.msra.mxu0 0.0
    %1147 = vmatprep.subr.mxu0 0.0
    %1148 = vmatpush1.xpose.msra.mxu0 0.0
    %1149 = vmatprep.subr.mxu0 0.0
    %1150 = vmatpush1.xpose.msra.mxu0 0.0
    %1151 = vmatprep.subr.mxu0 0.0
    %1152 = vmatpush1.xpose.msra.mxu0 0.0
    %1153 = vmatprep.subr.mxu0 0.0
    %1154 = vmatpush1.xpose.msra.mxu0 0.0
    %1155 = vmatprep.subr.mxu0 0.0
    %1156 = vmatpush1.xpose.msra.mxu0 0.0
    %1157 = vmatprep.subr.mxu0 0.0
    %1158 = vmatpush1.xpose.msra.mxu0 0.0
    %1159 = vmatprep.subr.mxu0 0.0
    %1160 = vmatpush1.xpose.msra.mxu0 0.0
    %1161 = vmatprep.subr.mxu0 0.0
    %1162 = vmatpush1.xpose.msra.mxu0 0.0
    %1163 = vmatprep.subr.mxu0 0.0
    %1164 = vmatpush1.xpose.msra.mxu0 0.0
    %1165 = vmatprep.subr.mxu0 0.0
    %1166 = vmatpush1.xpose.msra.mxu0 0.0
    %1167 = vmatprep.subr.mxu0 0.0
    %1168 = vmatpush1.xpose.msra.mxu0 0.0
    %1169 = vmatprep.subr.mxu0 0.0
    %1170 = vmatpush1.xpose.msra.mxu0 0.0
    %1171 = vmatprep.subr.mxu0 0.0
    %1172 = vmatpush1.xpose.msra.mxu0 0.0
    %1173 = vmatprep.subr.mxu0 0.0
    %v1174 = vand.u32 %v1065, 4294901760
    %v1175 = vsub.f32 %v1065, %v1174
    %v1176 = vand.u32 %v1175, 4294901760
    %v1177 = vsub.f32 %v1175, %v1176
    %v1178 = vand.u32 %v1177, 4294901760
    %1179 = vmatpush1.xpose.msra.mxu0 %v1178
    %1180 = vmatprep.subr.mxu0 0.0
    %1181 = vmatpush2.xpose.msra.mxu0 0.0
    %1182 = vmatprep.subr.mxu0 0.0
    %1183 = vmatpush2.xpose.msra.mxu0 0.0
    %1184 = vmatprep.subr.mxu0 0.0
    %1185 = vmatpush2.xpose.msra.mxu0 0.0
    %1186 = vmatprep.subr.mxu0 0.0
    %1187 = vmatpush2.xpose.msra.mxu0 0.0
    %1188 = vmatprep.subr.mxu0 0.0
    %1189 = vmatpush2.xpose.msra.mxu0 0.0
    %1190 = vmatprep.subr.mxu0 0.0
    %1191 = vmatpush2.xpose.msra.mxu0 0.0
    %1192 = vmatprep.subr.mxu0 0.0
    %1193 = vmatpush2.xpose.msra.mxu0 0.0
    %1194 = vmatprep.subr.mxu0 0.0
    %1195 = vmatpush2.xpose.msra.mxu0 0.0
    %1196 = vmatprep.subr.mxu0 0.0
    %1197 = vmatpush2.xpose.msra.mxu0 0.0
    %1198 = vmatprep.subr.mxu0 0.0
    %1199 = vmatpush2.xpose.msra.mxu0 0.0
    %1200 = vmatprep.subr.mxu0 0.0
    %1201 = vmatpush2.xpose.msra.mxu0 0.0
    %1202 = vmatprep.subr.mxu0 0.0
    %1203 = vmatpush2.xpose.msra.mxu0 0.0
    %1204 = vmatprep.subr.mxu0 0.0
    %1205 = vmatpush2.xpose.msra.mxu0 0.0
    %1206 = vmatprep.subr.mxu0 0.0
    %1207 = vmatpush2.xpose.msra.mxu0 0.0
    %1208 = vmatprep.subr.mxu0 0.0
    %1209 = vmatpush2.xpose.msra.mxu0 0.0
    %1210 = vmatprep.subr.mxu0 0.0
    %1211 = vmatpush2.xpose.msra.mxu0 0.0
    %1212 = vmatprep.mubr.f32.mxu0 0.0
    %v1213 = vand.u32 %v1062, 4294901760
    %1214 = vmatmul.mubr.f32.gmra.mxu0 %v1213
    %v1215 = vpop.f32.mrf.mxu0
    %v1216 = vadd.f32 %v1140, %v1215
    %v1217 = vpop.f32.mrf.mxu0
    %1218 = vdwg.mxu0
    %1219 = vmatprep.subr.mxu0 0.0
    %1220 = vmatpush1.xpose.msra.mxu0 0.0
    %1221 = vmatprep.subr.mxu0 0.0
    %1222 = vmatpush1.xpose.msra.mxu0 0.0
    %1223 = vmatprep.subr.mxu0 0.0
    %1224 = vmatpush1.xpose.msra.mxu0 0.0
    %1225 = vmatprep.subr.mxu0 0.0
    %1226 = vmatpush1.xpose.msra.mxu0 0.0
    %1227 = vmatprep.subr.mxu0 0.0
    %1228 = vmatpush1.xpose.msra.mxu0 0.0
    %1229 = vmatprep.subr.mxu0 0.0
    %1230 = vmatpush1.xpose.msra.mxu0 0.0
    %1231 = vmatprep.subr.mxu0 0.0
    %1232 = vmatpush1.xpose.msra.mxu0 0.0
    %1233 = vmatprep.subr.mxu0 0.0
    %1234 = vmatpush1.xpose.msra.mxu0 0.0
    %1235 = vmatprep.subr.mxu0 0.0
    %1236 = vmatpush1.xpose.msra.mxu0 0.0
    %1237 = vmatprep.subr.mxu0 0.0
    %1238 = vmatpush1.xpose.msra.mxu0 0.0
    %1239 = vmatprep.subr.mxu0 0.0
    %1240 = vmatpush1.xpose.msra.mxu0 0.0
    %1241 = vmatprep.subr.mxu0 0.0
    %1242 = vmatpush1.xpose.msra.mxu0 0.0
    %1243 = vmatprep.subr.mxu0 0.0
    %1244 = vmatpush1.xpose.msra.mxu0 0.0
    %1245 = vmatprep.subr.mxu0 0.0
    %1246 = vmatpush1.xpose.msra.mxu0 0.0
    %1247 = vmatprep.subr.mxu0 0.0
    %1248 = vmatpush1.xpose.msra.mxu0 0.0
    %1249 = vmatprep.subr.mxu0 0.0
    %v1250 = vand.u32 %v1065, 4294901760
    %v1251 = vsub.f32 %v1065, %v1250
    %1252 = vmatpush1.xpose.msra.mxu0 %v1251
    %1253 = vmatprep.subr.mxu0 0.0
    %1254 = vmatpush2.xpose.msra.mxu0 0.0
    %1255 = vmatprep.subr.mxu0 0.0
    %1256 = vmatpush2.xpose.msra.mxu0 0.0
    %1257 = vmatprep.subr.mxu0 0.0
    %1258 = vmatpush2.xpose.msra.mxu0 0.0
    %1259 = vmatprep.subr.mxu0 0.0
    %1260 = vmatpush2.xpose.msra.mxu0 0.0
    %1261 = vmatprep.subr.mxu0 0.0
    %1262 = vmatpush2.xpose.msra.mxu0 0.0
    %1263 = vmatprep.subr.mxu0 0.0
    %1264 = vmatpush2.xpose.msra.mxu0 0.0
    %1265 = vmatprep.subr.mxu0 0.0
    %1266 = vmatpush2.xpose.msra.mxu0 0.0
    %1267 = vmatprep.subr.mxu0 0.0
    %1268 = vmatpush2.xpose.msra.mxu0 0.0
    %1269 = vmatprep.subr.mxu0 0.0
    %1270 = vmatpush2.xpose.msra.mxu0 0.0
    %1271 = vmatprep.subr.mxu0 0.0
    %1272 = vmatpush2.xpose.msra.mxu0 0.0
    %1273 = vmatprep.subr.mxu0 0.0
    %1274 = vmatpush2.xpose.msra.mxu0 0.0
    %1275 = vmatprep.subr.mxu0 0.0
    %1276 = vmatpush2.xpose.msra.mxu0 0.0
    %1277 = vmatprep.subr.mxu0 0.0
    %1278 = vmatpush2.xpose.msra.mxu0 0.0
    %1279 = vmatprep.subr.mxu0 0.0
    %1280 = vmatpush2.xpose.msra.mxu0 0.0
    %1281 = vmatprep.subr.mxu0 0.0
    %1282 = vmatpush2.xpose.msra.mxu0 0.0
    %1283 = vmatprep.subr.mxu0 0.0
    %1284 = vmatpush2.xpose.msra.mxu0 0.0
    %1285 = vmatprep.mubr.f32.mxu0 0.0
    %v1286 = vand.u32 %v1062, 4294901760
    %v1287 = vsub.f32 %v1062, %v1286
    %1288 = vmatmul.mubr.f32.gmra.mxu0 %v1287
    %v1289 = vpop.f32.mrf.mxu0
    %v1290 = vadd.f32 %v1216, %v1289
    %v1291 = vpop.f32.mrf.mxu0
    %1292 = vdwg.mxu0
    %1293 = vmatprep.subr.mxu0 0.0
    %1294 = vmatpush1.xpose.msra.mxu0 0.0
    %1295 = vmatprep.subr.mxu0 0.0
    %1296 = vmatpush1.xpose.msra.mxu0 0.0
    %1297 = vmatprep.subr.mxu0 0.0
    %1298 = vmatpush1.xpose.msra.mxu0 0.0
    %1299 = vmatprep.subr.mxu0 0.0
    %1300 = vmatpush1.xpose.msra.mxu0 0.0
    %1301 = vmatprep.subr.mxu0 0.0
    %1302 = vmatpush1.xpose.msra.mxu0 0.0
    %1303 = vmatprep.subr.mxu0 0.0
    %1304 = vmatpush1.xpose.msra.mxu0 0.0
    %1305 = vmatprep.subr.mxu0 0.0
    %1306 = vmatpush1.xpose.msra.mxu0 0.0
    %1307 = vmatprep.subr.mxu0 0.0
    %1308 = vmatpush1.xpose.msra.mxu0 0.0
    %1309 = vmatprep.subr.mxu0 0.0
    %1310 = vmatpush1.xpose.msra.mxu0 0.0
    %1311 = vmatprep.subr.mxu0 0.0
    %1312 = vmatpush1.xpose.msra.mxu0 0.0
    %1313 = vmatprep.subr.mxu0 0.0
    %1314 = vmatpush1.xpose.msra.mxu0 0.0
    %1315 = vmatprep.subr.mxu0 0.0
    %1316 = vmatpush1.xpose.msra.mxu0 0.0
    %1317 = vmatprep.subr.mxu0 0.0
    %1318 = vmatpush1.xpose.msra.mxu0 0.0
    %1319 = vmatprep.subr.mxu0 0.0
    %1320 = vmatpush1.xpose.msra.mxu0 0.0
    %1321 = vmatprep.subr.mxu0 0.0
    %1322 = vmatpush1.xpose.msra.mxu0 0.0
    %1323 = vmatprep.subr.mxu0 0.0
    %v1324 = vand.u32 %v1065, 4294901760
    %1325 = vmatpush1.xpose.msra.mxu0 %v1324
    %1326 = vmatprep.subr.mxu0 0.0
    %1327 = vmatpush2.xpose.msra.mxu0 0.0
    %1328 = vmatprep.subr.mxu0 0.0
    %1329 = vmatpush2.xpose.msra.mxu0 0.0
    %1330 = vmatprep.subr.mxu0 0.0
    %1331 = vmatpush2.xpose.msra.mxu0 0.0
    %1332 = vmatprep.subr.mxu0 0.0
    %1333 = vmatpush2.xpose.msra.mxu0 0.0
    %1334 = vmatprep.subr.mxu0 0.0
    %1335 = vmatpush2.xpose.msra.mxu0 0.0
    %1336 = vmatprep.subr.mxu0 0.0
    %1337 = vmatpush2.xpose.msra.mxu0 0.0
    %1338 = vmatprep.subr.mxu0 0.0
    %1339 = vmatpush2.xpose.msra.mxu0 0.0
    %1340 = vmatprep.subr.mxu0 0.0
    %1341 = vmatpush2.xpose.msra.mxu0 0.0
    %1342 = vmatprep.subr.mxu0 0.0
    %1343 = vmatpush2.xpose.msra.mxu0 0.0
    %1344 = vmatprep.subr.mxu0 0.0
    %1345 = vmatpush2.xpose.msra.mxu0 0.0
    %1346 = vmatprep.subr.mxu0 0.0
    %1347 = vmatpush2.xpose.msra.mxu0 0.0
    %1348 = vmatprep.subr.mxu0 0.0
    %1349 = vmatpush2.xpose.msra.mxu0 0.0
    %1350 = vmatprep.subr.mxu0 0.0
    %1351 = vmatpush2.xpose.msra.mxu0 0.0
    %1352 = vmatprep.subr.mxu0 0.0
    %1353 = vmatpush2.xpose.msra.mxu0 0.0
    %1354 = vmatprep.subr.mxu0 0.0
    %1355 = vmatpush2.xpose.msra.mxu0 0.0
    %1356 = vmatprep.subr.mxu0 0.0
    %1357 = vmatpush2.xpose.msra.mxu0 0.0
    %1358 = vmatprep.mubr.f32.mxu0 0.0
    %v1359 = vand.u32 %v1062, 4294901760
    %v1360 = vsub.f32 %v1062, %v1359
    %v1361 = vand.u32 %v1360, 4294901760
    %1362 = vmatmul.mubr.f32.gmra.mxu0 %v1361
    %v1363 = vpop.f32.mrf.mxu0
    %v1364 = vadd.f32 %v1290, %v1363
    %v1365 = vpop.f32.mrf.mxu0
    %1366 = vdwg.mxu0
    %1367 = vmatprep.subr.mxu0 0.0
    %1368 = vmatpush1.xpose.msra.mxu0 0.0
    %1369 = vmatprep.subr.mxu0 0.0
    %1370 = vmatpush1.xpose.msra.mxu0 0.0
    %1371 = vmatprep.subr.mxu0 0.0
    %1372 = vmatpush1.xpose.msra.mxu0 0.0
    %1373 = vmatprep.subr.mxu0 0.0
    %1374 = vmatpush1.xpose.msra.mxu0 0.0
    %1375 = vmatprep.subr.mxu0 0.0
    %1376 = vmatpush1.xpose.msra.mxu0 0.0
    %1377 = vmatprep.subr.mxu0 0.0
    %1378 = vmatpush1.xpose.msra.mxu0 0.0
    %1379 = vmatprep.subr.mxu0 0.0
    %1380 = vmatpush1.xpose.msra.mxu0 0.0
    %1381 = vmatprep.subr.mxu0 0.0
    %1382 = vmatpush1.xpose.msra.mxu0 0.0
    %1383 = vmatprep.subr.mxu0 0.0
    %1384 = vmatpush1.xpose.msra.mxu0 0.0
    %1385 = vmatprep.subr.mxu0 0.0
    %1386 = vmatpush1.xpose.msra.mxu0 0.0
    %1387 = vmatprep.subr.mxu0 0.0
    %1388 = vmatpush1.xpose.msra.mxu0 0.0
    %1389 = vmatprep.subr.mxu0 0.0
    %1390 = vmatpush1.xpose.msra.mxu0 0.0
    %1391 = vmatprep.subr.mxu0 0.0
    %1392 = vmatpush1.xpose.msra.mxu0 0.0
    %1393 = vmatprep.subr.mxu0 0.0
    %1394 = vmatpush1.xpose.msra.mxu0 0.0
    %1395 = vmatprep.subr.mxu0 0.0
    %1396 = vmatpush1.xpose.msra.mxu0 0.0
    %1397 = vmatprep.subr.mxu0 0.0
    %v1398 = vand.u32 %v1065, 4294901760
    %v1399 = vsub.f32 %v1065, %v1398
    %v1400 = vand.u32 %v1399, 4294901760
    %1401 = vmatpush1.xpose.msra.mxu0 %v1400
    %1402 = vmatprep.subr.mxu0 0.0
    %1403 = vmatpush2.xpose.msra.mxu0 0.0
    %1404 = vmatprep.subr.mxu0 0.0
    %1405 = vmatpush2.xpose.msra.mxu0 0.0
    %1406 = vmatprep.subr.mxu0 0.0
    %1407 = vmatpush2.xpose.msra.mxu0 0.0
    %1408 = vmatprep.subr.mxu0 0.0
    %1409 = vmatpush2.xpose.msra.mxu0 0.0
    %1410 = vmatprep.subr.mxu0 0.0
    %1411 = vmatpush2.xpose.msra.mxu0 0.0
    %1412 = vmatprep.subr.mxu0 0.0
    %1413 = vmatpush2.xpose.msra.mxu0 0.0
    %1414 = vmatprep.subr.mxu0 0.0
    %1415 = vmatpush2.xpose.msra.mxu0 0.0
    %1416 = vmatprep.subr.mxu0 0.0
    %1417 = vmatpush2.xpose.msra.mxu0 0.0
    %1418 = vmatprep.subr.mxu0 0.0
    %1419 = vmatpush2.xpose.msra.mxu0 0.0
    %1420 = vmatprep.subr.mxu0 0.0
    %1421 = vmatpush2.xpose.msra.mxu0 0.0
    %1422 = vmatprep.subr.mxu0 0.0
    %1423 = vmatpush2.xpose.msra.mxu0 0.0
    %1424 = vmatprep.subr.mxu0 0.0
    %1425 = vmatpush2.xpose.msra.mxu0 0.0
    %1426 = vmatprep.subr.mxu0 0.0
    %1427 = vmatpush2.xpose.msra.mxu0 0.0
    %1428 = vmatprep.subr.mxu0 0.0
    %1429 = vmatpush2.xpose.msra.mxu0 0.0
    %1430 = vmatprep.subr.mxu0 0.0
    %1431 = vmatpush2.xpose.msra.mxu0 0.0
    %1432 = vmatprep.subr.mxu0 0.0
    %1433 = vmatpush2.xpose.msra.mxu0 0.0
    %1434 = vmatprep.mubr.f32.mxu0 0.0
    %v1435 = vand.u32 %v1062, 4294901760
    %1436 = vmatmul.mubr.f32.gmra.mxu0 %v1435
    %v1437 = vpop.f32.mrf.mxu0
    %v1438 = vadd.f32 %v1364, %v1437
    %v1439 = vpop.f32.mrf.mxu0
    %1440 = vdwg.mxu0
    %1441 = vmatprep.subr.mxu0 0.0
    %1442 = vmatpush1.xpose.msra.mxu0 0.0
    %1443 = vmatprep.subr.mxu0 0.0
    %1444 = vmatpush1.xpose.msra.mxu0 0.0
    %1445 = vmatprep.subr.mxu0 0.0
    %1446 = vmatpush1.xpose.msra.mxu0 0.0
    %1447 = vmatprep.subr.mxu0 0.0
    %1448 = vmatpush1.xpose.msra.mxu0 0.0
    %1449 = vmatprep.subr.mxu0 0.0
    %1450 = vmatpush1.xpose.msra.mxu0 0.0
    %1451 = vmatprep.subr.mxu0 0.0
    %1452 = vmatpush1.xpose.msra.mxu0 0.0
    %1453 = vmatprep.subr.mxu0 0.0
    %1454 = vmatpush1.xpose.msra.mxu0 0.0
    %1455 = vmatprep.subr.mxu0 0.0
    %1456 = vmatpush1.xpose.msra.mxu0 0.0
    %1457 = vmatprep.subr.mxu0 0.0
    %1458 = vmatpush1.xpose.msra.mxu0 0.0
    %1459 = vmatprep.subr.mxu0 0.0
    %1460 = vmatpush1.xpose.msra.mxu0 0.0
    %1461 = vmatprep.subr.mxu0 0.0
    %1462 = vmatpush1.xpose.msra.mxu0 0.0
    %1463 = vmatprep.subr.mxu0 0.0
    %1464 = vmatpush1.xpose.msra.mxu0 0.0
    %1465 = vmatprep.subr.mxu0 0.0
    %1466 = vmatpush1.xpose.msra.mxu0 0.0
    %1467 = vmatprep.subr.mxu0 0.0
    %1468 = vmatpush1.xpose.msra.mxu0 0.0
    %1469 = vmatprep.subr.mxu0 0.0
    %1470 = vmatpush1.xpose.msra.mxu0 0.0
    %1471 = vmatprep.subr.mxu0 0.0
    %v1472 = vand.u32 %v1065, 4294901760
    %1473 = vmatpush1.xpose.msra.mxu0 %v1472
    %1474 = vmatprep.subr.mxu0 0.0
    %1475 = vmatpush2.xpose.msra.mxu0 0.0
    %1476 = vmatprep.subr.mxu0 0.0
    %1477 = vmatpush2.xpose.msra.mxu0 0.0
    %1478 = vmatprep.subr.mxu0 0.0
    %1479 = vmatpush2.xpose.msra.mxu0 0.0
    %1480 = vmatprep.subr.mxu0 0.0
    %1481 = vmatpush2.xpose.msra.mxu0 0.0
    %1482 = vmatprep.subr.mxu0 0.0
    %1483 = vmatpush2.xpose.msra.mxu0 0.0
    %1484 = vmatprep.subr.mxu0 0.0
    %1485 = vmatpush2.xpose.msra.mxu0 0.0
    %1486 = vmatprep.subr.mxu0 0.0
    %1487 = vmatpush2.xpose.msra.mxu0 0.0
    %1488 = vmatprep.subr.mxu0 0.0
    %1489 = vmatpush2.xpose.msra.mxu0 0.0
    %1490 = vmatprep.subr.mxu0 0.0
    %1491 = vmatpush2.xpose.msra.mxu0 0.0
    %1492 = vmatprep.subr.mxu0 0.0
    %1493 = vmatpush2.xpose.msra.mxu0 0.0
    %1494 = vmatprep.subr.mxu0 0.0
    %1495 = vmatpush2.xpose.msra.mxu0 0.0
    %1496 = vmatprep.subr.mxu0 0.0
    %1497 = vmatpush2.xpose.msra.mxu0 0.0
    %1498 = vmatprep.subr.mxu0 0.0
    %1499 = vmatpush2.xpose.msra.mxu0 0.0
    %1500 = vmatprep.subr.mxu0 0.0
    %1501 = vmatpush2.xpose.msra.mxu0 0.0
    %1502 = vmatprep.subr.mxu0 0.0
    %1503 = vmatpush2.xpose.msra.mxu0 0.0
    %1504 = vmatprep.subr.mxu0 0.0
    %1505 = vmatpush2.xpose.msra.mxu0 0.0
    %1506 = vmatprep.mubr.f32.mxu0 0.0
    %v1507 = vand.u32 %v1062, 4294901760
    %1508 = vmatmul.mubr.f32.gmra.mxu0 %v1507
    %v1509 = vpop.f32.mrf.mxu0
    %v1510 = vadd.f32 %v1438, %v1509
    %v1511 = vpop.f32.mrf.mxu0
    %1512 = vdwg.mxu0
    %vm1513 = vcmask 8192
    %1514 = vst.msk [vmem:[#allocation8] sm:$0x1] %vm1513, %v1510
    // Predicated region
    $region38: #{tpu_custom_call.1} parent=1 // pred_check
      _
    $region39: #{tpu_custom_call.1} parent=1 // pred_check_branch
      %1516 = sbr.rel (0) target = $region41
    $region40: #{tpu_custom_call.1} parent=1 // pred_region
      %s1518 = ssub.s32 16, 16
      %1519 = vsyncadd [#allocation5], %s1518
      %s1521 = sshll.u32 [#allocation8], 4
      %s1522 = int_to_ptr.vmem [resolvable:$true] %s1521
      %1524 = dma.vmem_to_hbm [thread:$0]  %s1522, 16, %s7, [#allocation5]
    $region41: #{tpu_custom_call.1} parent=1 // pred_fallthru
      _
    // Predicated region
    $region42: #{tpu_custom_call.1} parent=1 // pred_check
      _
    $region43: #{tpu_custom_call.1} parent=1 // pred_check_branch
      %1526 = sbr.rel (0) target = $region45
    $region44: #{tpu_custom_call.1} parent=1 // pred_region
      %1527 = dma.done [#allocation5], 16
    $region45: #{tpu_custom_call.1} parent=1 // pred_fallthru
      _
    %1528 = vsyncpa [#allocation4], 1
    %1529 = vsyncpa [#allocation7], 1
    %1530 = vsyncpa [#allocation5], 1

</llo_original>
